<compile_context>
chip_gen: v7x
topology: tpu7x:2x2x1
jax: 0.10.0
libtpu: 0.0.40
codegen_flags: <defaults>
</compile_context>

<pallas_src>
import functools

import jax
import jax.numpy as jnp
from jax.experimental import pallas as pl
from jax.experimental.pallas import tpu as pltpu

K = 7     # conv kernel size
PAD = 3   # conv padding


def _spatial_attn_kernel(x_ref, s_ref, t_ref, b_ref, o_ref,
                         sum_ref, max_ref, *, nb, H, W):
    # x_ref: (nb, c_tile, H, W)     input tile
    # s_ref: (K, nb*H, nb*H)        block-diag height-shift matrices (resident)
    # t_ref: (K, 2W, W)             width-tap Toeplitz, avg rows on top (resident)
    # b_ref: (1,) SMEM              conv bias
    # o_ref: (nb, H, W)             sigmoid(conv) output
    c_idx = pl.program_id(1)

    @pl.when(c_idx == 0)
    def _init():
        sum_ref[...] = jnp.zeros((nb, H, W), jnp.float32)
        max_ref[...] = jnp.full((nb, H, W), -jnp.inf, jnp.float32)

    # Streamed channel reduction for this C tile.
    x = x_ref[...].astype(jnp.float32)                      # (nb, c_tile, H, W)
    sum_ref[...] += jnp.sum(x, axis=1)
    max_ref[...] = jnp.maximum(max_ref[...], jnp.max(x, axis=1))

    @pl.when(c_idx == pl.num_programs(1) - 1)
    def _finalize():
        P = nb * H
        # H % 8 == 0 whenever nb > 1, so these reshapes are layout-preserving.
        f_avg = sum_ref[...].reshape(P, W)    # plain sum; 1/C folded into t_ref[:, :W]
        f_max = max_ref[...].reshape(P, W)
        f = jnp.concatenate([f_avg, f_max], axis=1)         # (P, 2W)
        acc = jnp.full((P, W), b_ref[0], dtype=jnp.float32)
        for di in range(K):      # static unroll: 2 MXU matmuls per height tap
            m = jnp.dot(f, t_ref[di], preferred_element_type=jnp.float32)      # (P, W)
            acc = acc + jnp.dot(s_ref[di], m, preferred_element_type=jnp.float32)
        o_ref[...] = jax.nn.sigmoid(acc).reshape(nb, H, W)


def _build_conv_operands(weight, bias, C, H, W, nb):
    """Fold zero padding, width taps, both channels and 1/C into banded matrices."""
    w = weight.reshape(2, K, K).astype(jnp.float32)
    w = w.at[0].multiply(1.0 / C)                # mean = (1/C) * sum, folded here

    # Width-tap Toeplitz: T[c, di][j, j'] = w[c, di, j - j' + PAD]  (else 0)
    j = jnp.arange(W)
    diff = j[:, None] - j[None, :] + PAD                                 # (W, W)
    valid = (diff >= 0) & (diff < K)
    idx = jnp.clip(diff, 0, K - 1)
    toep = jnp.where(valid[None, None], w[:, :, idx], 0.0)               # (2, K, W, W)
    # Stack avg-channel and max-channel taps along the contraction axis -> (K, 2W, W)
    tcat = jnp.concatenate([toep[0], toep[1]], axis=1)

    # Height-shift matrices: S[di][i, i'] = 1 iff i' == i + di - PAD (zero pad free),
    # then block-diagonal over the nb images processed per grid step.
    i = jnp.arange(H)
    shift = [
        (i[None, :] == i[:, None] + (di - PAD)).astype(jnp.float32)      # (H, H)
        for di in range(K)
    ]
    eye_nb = jnp.eye(nb, dtype=jnp.float32)
    s_big = jnp.stack([jnp.kron(eye_nb, s) for s in shift], axis=0)      # (K, nb*H, nb*H)

    return s_big, tcat, bias.astype(jnp.float32)


def _pick_nb(N, H, max_rows=256):
    """Images per grid step; only batch when reshapes stay layout-preserving."""
    if H % 8 != 0:
        return 1
    best = 1
    for nb in range(1, N + 1):
        if N % nb == 0 and nb * H <= max_rows:
            best = nb
    return best


def _pick_c_tile(C, per_channel_bytes, budget=2 * 1024 * 1024):
    """Largest divisor of C whose (double-buffered) input block fits the budget."""
    best = 1
    for t in range(1, C + 1):
        if C % t == 0 and t * per_channel_bytes <= budget:
            best = t
    return best


def spatial_attention(x, weight, bias, *, c_tile=None, nb=None):
    """x: (N, C, H, W); weight: (1, 2, 7, 7); bias: (1,) -> (N, 1, H, W) f32."""
    N, C, H, W = x.shape
    if nb is None:
        nb = _pick_nb(N, H)
    assert N % nb == 0, (N, nb)
    if c_tile is None:
        c_tile = _pick_c_tile(C, nb * H * W * x.dtype.itemsize)
    assert C % c_tile == 0, (C, c_tile)

    s_big, tcat, b = _build_conv_operands(weight, bias, C, H, W, nb)
    kernel = functools.partial(_spatial_attn_kernel, nb=nb, H=H, W=W)

    out = pl.pallas_call(
        kernel,
        out_shape=jax.ShapeDtypeStruct((N, H, W), jnp.float32),
        grid=(N // nb, C // c_tile),
        in_specs=[
            pl.BlockSpec((nb, c_tile, H, W), lambda n, c: (n, c, 0, 0)),
            pl.BlockSpec((K, nb * H, nb * H), lambda n, c: (0, 0, 0)),
            pl.BlockSpec((K, 2 * W, W), lambda n, c: (0, 0, 0)),
            pl.BlockSpec(memory_space=pltpu.MemorySpace.SMEM),
        ],
        out_specs=pl.BlockSpec((nb, H, W), lambda n, c: (n, 0, 0)),
        scratch_shapes=[
            pltpu.VMEM((nb, H, W), jnp.float32),   # running channel sum
            pltpu.VMEM((nb, H, W), jnp.float32),   # running channel max
        ],
        compiler_params=pltpu.CompilerParams(
            dimension_semantics=("parallel", "arbitrary")),
    )(x, s_big, tcat, b)
    return out.reshape(N, 1, H, W)


def _reference_forward(x, weight, bias):
    """Pure-JAX reference matching the PyTorch module semantics."""
    avg = jnp.mean(x, axis=1, keepdims=True)
    mx = jnp.max(x, axis=1, keepdims=True)
    cat = jnp.concatenate([avg, mx], axis=1)             # (N, 2, H, W)
    out = jax.lax.conv_general_dilated(
        cat, weight, window_strides=(1, 1),
        padding=[(PAD, PAD), (PAD, PAD)],
        dimension_numbers=("NCHW", "OIHW", "NCHW"),
        precision=jax.lax.Precision.HIGHEST)
    return jax.nn.sigmoid(out + bias.reshape(1, 1, 1, 1))


if __name__ == "__main__":
    key = jax.random.PRNGKey(0)
    kx, kw, kb = jax.random.split(key, 3)

    N, C, H, W = 2, 4, 16, 16
    x = jax.random.normal(kx, (N, C, H, W), dtype=jnp.float32)

    # Conv2d(2, 1, 7, padding=3) parameters, kaiming-uniform-like bounds.
    fan_in = 2 * K * K
    bound = 1.0 / (fan_in ** 0.5)
    weight = jax.random.uniform(kw, (1, 2, K, K), jnp.float32, -bound, bound)
    bias = jax.random.uniform(kb, (1,), jnp.float32, -bound, bound)

    ref = _reference_forward(x, weight, bias)

    # 1) streamed channel-reduction path (c_tile=2 -> two C steps per image group)
    out_stream = jax.block_until_ready(spatial_attention(x, weight, bias, c_tile=2))
    assert out_stream.shape == (N, 1, H, W), out_stream.shape
    err_stream = float(jnp.max(jnp.abs(out_stream - ref)))
    assert err_stream < 1e-3, err_stream

    # 2) default tiling (whole C in one step, nb images batched per grid step)
    out_default = jax.block_until_ready(spatial_attention(x, weight, bias))
    err_default = float(jnp.max(jnp.abs(out_default - ref)))
    assert err_default < 1e-3, err_default

    print("KERNEL_OK")
</pallas_src>

<mosaic_0001>
module attributes {stable_mosaic.version = 11 : i64} {
  func.func @_spatial_attn_kernel(%arg0: i32, %arg1: i32, %arg2: memref<2x2x16x16xf32, #tpu.memory_space<vmem>>, %arg3: memref<7x32x32xf32, #tpu.memory_space<vmem>>, %arg4: memref<7x32x16xf32, #tpu.memory_space<vmem>>, %arg5: memref<1xf32, #tpu.memory_space<smem>>, %arg6: memref<2x16x16xf32, #tpu.memory_space<vmem>>, %arg7: memref<2x16x16xf32, #tpu.memory_space<vmem>>, %arg8: memref<2x16x16xf32, #tpu.memory_space<vmem>>) attributes {dimension_semantics = [#tpu.dimension_semantics<parallel>, #tpu.dimension_semantics<arbitrary>], iteration_bounds = array<i64: 1, 2>, scalar_prefetch = 0 : i64, scratch_operands = 2 : i64, tpu.core_type = #tpu.core_type<tc>, window_params = [{transform_indices = @transform_0, window_bounds = array<i64: 2, 2, 16, 16>}, {pipeline_mode = #tpu.pipeline_mode<synchronous>, transform_indices = @transform_1, window_bounds = array<i64: 7, 32, 32>}, {pipeline_mode = #tpu.pipeline_mode<synchronous>, transform_indices = @transform_2, window_bounds = array<i64: 7, 32, 16>}, {transform_indices = @transform_3, window_bounds = array<i64: 1>}, {transform_indices = @transform_4, window_bounds = array<i64: 2, 16, 16>}]} {
    %c0_i32 = arith.constant 0 : i32
    %0 = arith.cmpi eq, %arg1, %c0_i32 : i32
    %1 = arith.extui %0 : i1 to i32
    %c0_i32_0 = arith.constant 0 : i32
    %2 = arith.cmpi ne, %1, %c0_i32_0 : i32
    scf.if %2 {
      %cst_18 = arith.constant 0.000000e+00 : f32
      %15 = vector.broadcast %cst_18 : f32 to vector<2x16x16xf32>
      %c0_19 = arith.constant 0 : index
      %c0_20 = arith.constant 0 : index
      %c0_21 = arith.constant 0 : index
      %16 = vector.load %arg7[%c0_19, %c0_20, %c0_21] : memref<2x16x16xf32, #tpu.memory_space<vmem>>, vector<2x16x16xf32>
      tpu.vector_store %arg7[%c0_19, %c0_20, %c0_21], %15 {strides = array<i32>} : memref<2x16x16xf32, #tpu.memory_space<vmem>>, vector<2x16x16xf32>,
      %cst_22 = arith.constant 0xFF800000 : f32
      %17 = vector.broadcast %cst_22 : f32 to vector<2x16x16xf32>
      %c0_23 = arith.constant 0 : index
      %c0_24 = arith.constant 0 : index
      %c0_25 = arith.constant 0 : index
      %18 = vector.load %arg8[%c0_23, %c0_24, %c0_25] : memref<2x16x16xf32, #tpu.memory_space<vmem>>, vector<2x16x16xf32>
      tpu.vector_store %arg8[%c0_23, %c0_24, %c0_25], %17 {strides = array<i32>} : memref<2x16x16xf32, #tpu.memory_space<vmem>>, vector<2x16x16xf32>,
    } else {
    }
    %c0 = arith.constant 0 : index
    %c0_1 = arith.constant 0 : index
    %c0_2 = arith.constant 0 : index
    %c0_3 = arith.constant 0 : index
    %3 = vector.load %arg2[%c0, %c0_1, %c0_2, %c0_3] : memref<2x2x16x16xf32, #tpu.memory_space<vmem>>, vector<2x2x16x16xf32>
    %c0_4 = arith.constant 0 : index
    %c0_5 = arith.constant 0 : index
    %c0_6 = arith.constant 0 : index
    %4 = vector.load %arg7[%c0_4, %c0_5, %c0_6] : memref<2x16x16xf32, #tpu.memory_space<vmem>>, vector<2x16x16xf32>
    %cst = arith.constant dense<0.000000e+00> : vector<2x16x16xf32>
    %5 = vector.multi_reduction <add>, %3, %cst [1] : vector<2x2x16x16xf32> to vector<2x16x16xf32>
    %6 = arith.addf %4, %5 : vector<2x16x16xf32>
    %c0_7 = arith.constant 0 : index
    %c0_8 = arith.constant 0 : index
    %c0_9 = arith.constant 0 : index
    %7 = vector.load %arg7[%c0_7, %c0_8, %c0_9] : memref<2x16x16xf32, #tpu.memory_space<vmem>>, vector<2x16x16xf32>
    tpu.vector_store %arg7[%c0_7, %c0_8, %c0_9], %6 {strides = array<i32>} : memref<2x16x16xf32, #tpu.memory_space<vmem>>, vector<2x16x16xf32>,
    %c0_10 = arith.constant 0 : index
    %c0_11 = arith.constant 0 : index
    %c0_12 = arith.constant 0 : index
    %8 = vector.load %arg8[%c0_10, %c0_11, %c0_12] : memref<2x16x16xf32, #tpu.memory_space<vmem>>, vector<2x16x16xf32>
    %cst_13 = arith.constant dense<0xFF800000> : vector<2x16x16xf32>
    %9 = vector.multi_reduction <maximumf>, %3, %cst_13 [1] : vector<2x2x16x16xf32> to vector<2x16x16xf32>
    %10 = arith.maximumf %8, %9 : vector<2x16x16xf32>
    %c0_14 = arith.constant 0 : index
    %c0_15 = arith.constant 0 : index
    %c0_16 = arith.constant 0 : index
    %11 = vector.load %arg8[%c0_14, %c0_15, %c0_16] : memref<2x16x16xf32, #tpu.memory_space<vmem>>, vector<2x16x16xf32>
    tpu.vector_store %arg8[%c0_14, %c0_15, %c0_16], %10 {strides = array<i32>} : memref<2x16x16xf32, #tpu.memory_space<vmem>>, vector<2x16x16xf32>,
    %c1_i32 = arith.constant 1 : i32
    %12 = arith.cmpi eq, %arg1, %c1_i32 : i32
    %13 = arith.extui %12 : i1 to i32
    %c0_i32_17 = arith.constant 0 : i32
    %14 = arith.cmpi ne, %13, %c0_i32_17 : i32
    scf.if %14 {
      %c0_18 = arith.constant 0 : index
      %c0_19 = arith.constant 0 : index
      %c0_20 = arith.constant 0 : index
      %15 = vector.load %arg7[%c0_18, %c0_19, %c0_20] : memref<2x16x16xf32, #tpu.memory_space<vmem>>, vector<2x16x16xf32>
      %16 = vector.shape_cast %15 : vector<2x16x16xf32> to vector<32x16xf32>
      %c0_21 = arith.constant 0 : index
      %c0_22 = arith.constant 0 : index
      %c0_23 = arith.constant 0 : index
      %17 = vector.load %arg8[%c0_21, %c0_22, %c0_23] : memref<2x16x16xf32, #tpu.memory_space<vmem>>, vector<2x16x16xf32>
      %18 = vector.shape_cast %17 : vector<2x16x16xf32> to vector<32x16xf32>
      %19 = tpu.concatenate %16, %18 in 1 : vector<32x16xf32>, vector<32x16xf32> -> vector<32x32xf32>
      %c0_24 = arith.constant 0 : index
      %20 = memref.load %arg5[%c0_24] : memref<1xf32, #tpu.memory_space<smem>>
      %21 = vector.broadcast %20 : f32 to vector<32x16xf32>
      %c0_25 = arith.constant 0 : index
      %c0_26 = arith.constant 0 : index
      %c0_27 = arith.constant 0 : index
      %22 = vector.load %arg4[%c0_25, %c0_26, %c0_27] : memref<7x32x16xf32, #tpu.memory_space<vmem>>, vector<1x32x16xf32>
      %23 = vector.shape_cast %22 : vector<1x32x16xf32> to vector<32x16xf32>
      %cst_28 = arith.constant dense<0.000000e+00> : vector<32x16xf32>
      %24 = tpu.matmul %19, %23, %cst_28 {dimension_numbers = #tpu.dot_dimension_numbers<[1], [0], [0], [1], [0, 0, 1, 1], [], []>} : vector<32x32xf32>, vector<32x16xf32>, vector<32x16xf32> -> vector<32x16xf32>
      %c0_29 = arith.constant 0 : index
      %c0_30 = arith.constant 0 : index
      %c0_31 = arith.constant 0 : index
      %25 = vector.load %arg3[%c0_29, %c0_30, %c0_31] : memref<7x32x32xf32, #tpu.memory_space<vmem>>, vector<1x32x32xf32>
      %26 = vector.shape_cast %25 : vector<1x32x32xf32> to vector<32x32xf32>
      %cst_32 = arith.constant dense<0.000000e+00> : vector<32x16xf32>
      %27 = tpu.matmul %26, %24, %cst_32 {dimension_numbers = #tpu.dot_dimension_numbers<[1], [0], [0], [1], [0, 0, 1, 1], [], []>} : vector<32x32xf32>, vector<32x16xf32>, vector<32x16xf32> -> vector<32x16xf32>
      %28 = arith.addf %21, %27 : vector<32x16xf32>
      %c1 = arith.constant 1 : index
      %c0_33 = arith.constant 0 : index
      %c0_34 = arith.constant 0 : index
      %29 = vector.load %arg4[%c1, %c0_33, %c0_34] : memref<7x32x16xf32, #tpu.memory_space<vmem>>, vector<1x32x16xf32>
      %30 = vector.shape_cast %29 : vector<1x32x16xf32> to vector<32x16xf32>
      %cst_35 = arith.constant dense<0.000000e+00> : vector<32x16xf32>
      %31 = tpu.matmul %19, %30, %cst_35 {dimension_numbers = #tpu.dot_dimension_numbers<[1], [0], [0], [1], [0, 0, 1, 1], [], []>} : vector<32x32xf32>, vector<32x16xf32>, vector<32x16xf32> -> vector<32x16xf32>
      %c1_36 = arith.constant 1 : index
      %c0_37 = arith.constant 0 : index
      %c0_38 = arith.constant 0 : index
      %32 = vector.load %arg3[%c1_36, %c0_37, %c0_38] : memref<7x32x32xf32, #tpu.memory_space<vmem>>, vector<1x32x32xf32>
      %33 = vector.shape_cast %32 : vector<1x32x32xf32> to vector<32x32xf32>
      %cst_39 = arith.constant dense<0.000000e+00> : vector<32x16xf32>
      %34 = tpu.matmul %33, %31, %cst_39 {dimension_numbers = #tpu.dot_dimension_numbers<[1], [0], [0], [1], [0, 0, 1, 1], [], []>} : vector<32x32xf32>, vector<32x16xf32>, vector<32x16xf32> -> vector<32x16xf32>
      %35 = arith.addf %28, %34 : vector<32x16xf32>
      %c2 = arith.constant 2 : index
      %c0_40 = arith.constant 0 : index
      %c0_41 = arith.constant 0 : index
      %36 = vector.load %arg4[%c2, %c0_40, %c0_41] : memref<7x32x16xf32, #tpu.memory_space<vmem>>, vector<1x32x16xf32>
      %37 = vector.shape_cast %36 : vector<1x32x16xf32> to vector<32x16xf32>
      %cst_42 = arith.constant dense<0.000000e+00> : vector<32x16xf32>
      %38 = tpu.matmul %19, %37, %cst_42 {dimension_numbers = #tpu.dot_dimension_numbers<[1], [0], [0], [1], [0, 0, 1, 1], [], []>} : vector<32x32xf32>, vector<32x16xf32>, vector<32x16xf32> -> vector<32x16xf32>
      %c2_43 = arith.constant 2 : index
      %c0_44 = arith.constant 0 : index
      %c0_45 = arith.constant 0 : index
      %39 = vector.load %arg3[%c2_43, %c0_44, %c0_45] : memref<7x32x32xf32, #tpu.memory_space<vmem>>, vector<1x32x32xf32>
      %40 = vector.shape_cast %39 : vector<1x32x32xf32> to vector<32x32xf32>
      %cst_46 = arith.constant dense<0.000000e+00> : vector<32x16xf32>
      %41 = tpu.matmul %40, %38, %cst_46 {dimension_numbers = #tpu.dot_dimension_numbers<[1], [0], [0], [1], [0, 0, 1, 1], [], []>} : vector<32x32xf32>, vector<32x16xf32>, vector<32x16xf32> -> vector<32x16xf32>
      %42 = arith.addf %35, %41 : vector<32x16xf32>
      %c3 = arith.constant 3 : index
      %c0_47 = arith.constant 0 : index
      %c0_48 = arith.constant 0 : index
      %43 = vector.load %arg4[%c3, %c0_47, %c0_48] : memref<7x32x16xf32, #tpu.memory_space<vmem>>, vector<1x32x16xf32>
      %44 = vector.shape_cast %43 : vector<1x32x16xf32> to vector<32x16xf32>
      %cst_49 = arith.constant dense<0.000000e+00> : vector<32x16xf32>
      %45 = tpu.matmul %19, %44, %cst_49 {dimension_numbers = #tpu.dot_dimension_numbers<[1], [0], [0], [1], [0, 0, 1, 1], [], []>} : vector<32x32xf32>, vector<32x16xf32>, vector<32x16xf32> -> vector<32x16xf32>
      %c3_50 = arith.constant 3 : index
      %c0_51 = arith.constant 0 : index
      %c0_52 = arith.constant 0 : index
      %46 = vector.load %arg3[%c3_50, %c0_51, %c0_52] : memref<7x32x32xf32, #tpu.memory_space<vmem>>, vector<1x32x32xf32>
      %47 = vector.shape_cast %46 : vector<1x32x32xf32> to vector<32x32xf32>
      %cst_53 = arith.constant dense<0.000000e+00> : vector<32x16xf32>
      %48 = tpu.matmul %47, %45, %cst_53 {dimension_numbers = #tpu.dot_dimension_numbers<[1], [0], [0], [1], [0, 0, 1, 1], [], []>} : vector<32x32xf32>, vector<32x16xf32>, vector<32x16xf32> -> vector<32x16xf32>
      %49 = arith.addf %42, %48 : vector<32x16xf32>
      %c4 = arith.constant 4 : index
      %c0_54 = arith.constant 0 : index
      %c0_55 = arith.constant 0 : index
      %50 = vector.load %arg4[%c4, %c0_54, %c0_55] : memref<7x32x16xf32, #tpu.memory_space<vmem>>, vector<1x32x16xf32>
      %51 = vector.shape_cast %50 : vector<1x32x16xf32> to vector<32x16xf32>
      %cst_56 = arith.constant dense<0.000000e+00> : vector<32x16xf32>
      %52 = tpu.matmul %19, %51, %cst_56 {dimension_numbers = #tpu.dot_dimension_numbers<[1], [0], [0], [1], [0, 0, 1, 1], [], []>} : vector<32x32xf32>, vector<32x16xf32>, vector<32x16xf32> -> vector<32x16xf32>
      %c4_57 = arith.constant 4 : index
      %c0_58 = arith.constant 0 : index
      %c0_59 = arith.constant 0 : index
      %53 = vector.load %arg3[%c4_57, %c0_58, %c0_59] : memref<7x32x32xf32, #tpu.memory_space<vmem>>, vector<1x32x32xf32>
      %54 = vector.shape_cast %53 : vector<1x32x32xf32> to vector<32x32xf32>
      %cst_60 = arith.constant dense<0.000000e+00> : vector<32x16xf32>
      %55 = tpu.matmul %54, %52, %cst_60 {dimension_numbers = #tpu.dot_dimension_numbers<[1], [0], [0], [1], [0, 0, 1, 1], [], []>} : vector<32x32xf32>, vector<32x16xf32>, vector<32x16xf32> -> vector<32x16xf32>
      %56 = arith.addf %49, %55 : vector<32x16xf32>
      %c5 = arith.constant 5 : index
      %c0_61 = arith.constant 0 : index
      %c0_62 = arith.constant 0 : index
      %57 = vector.load %arg4[%c5, %c0_61, %c0_62] : memref<7x32x16xf32, #tpu.memory_space<vmem>>, vector<1x32x16xf32>
      %58 = vector.shape_cast %57 : vector<1x32x16xf32> to vector<32x16xf32>
      %cst_63 = arith.constant dense<0.000000e+00> : vector<32x16xf32>
      %59 = tpu.matmul %19, %58, %cst_63 {dimension_numbers = #tpu.dot_dimension_numbers<[1], [0], [0], [1], [0, 0, 1, 1], [], []>} : vector<32x32xf32>, vector<32x16xf32>, vector<32x16xf32> -> vector<32x16xf32>
      %c5_64 = arith.constant 5 : index
      %c0_65 = arith.constant 0 : index
      %c0_66 = arith.constant 0 : index
      %60 = vector.load %arg3[%c5_64, %c0_65, %c0_66] : memref<7x32x32xf32, #tpu.memory_space<vmem>>, vector<1x32x32xf32>
      %61 = vector.shape_cast %60 : vector<1x32x32xf32> to vector<32x32xf32>
      %cst_67 = arith.constant dense<0.000000e+00> : vector<32x16xf32>
      %62 = tpu.matmul %61, %59, %cst_67 {dimension_numbers = #tpu.dot_dimension_numbers<[1], [0], [0], [1], [0, 0, 1, 1], [], []>} : vector<32x32xf32>, vector<32x16xf32>, vector<32x16xf32> -> vector<32x16xf32>
      %63 = arith.addf %56, %62 : vector<32x16xf32>
      %c6 = arith.constant 6 : index
      %c0_68 = arith.constant 0 : index
      %c0_69 = arith.constant 0 : index
      %64 = vector.load %arg4[%c6, %c0_68, %c0_69] : memref<7x32x16xf32, #tpu.memory_space<vmem>>, vector<1x32x16xf32>
      %65 = vector.shape_cast %64 : vector<1x32x16xf32> to vector<32x16xf32>
      %cst_70 = arith.constant dense<0.000000e+00> : vector<32x16xf32>
      %66 = tpu.matmul %19, %65, %cst_70 {dimension_numbers = #tpu.dot_dimension_numbers<[1], [0], [0], [1], [0, 0, 1, 1], [], []>} : vector<32x32xf32>, vector<32x16xf32>, vector<32x16xf32> -> vector<32x16xf32>
      %c6_71 = arith.constant 6 : index
      %c0_72 = arith.constant 0 : index
      %c0_73 = arith.constant 0 : index
      %67 = vector.load %arg3[%c6_71, %c0_72, %c0_73] : memref<7x32x32xf32, #tpu.memory_space<vmem>>, vector<1x32x32xf32>
      %68 = vector.shape_cast %67 : vector<1x32x32xf32> to vector<32x32xf32>
      %cst_74 = arith.constant dense<0.000000e+00> : vector<32x16xf32>
      %69 = tpu.matmul %68, %66, %cst_74 {dimension_numbers = #tpu.dot_dimension_numbers<[1], [0], [0], [1], [0, 0, 1, 1], [], []>} : vector<32x32xf32>, vector<32x16xf32>, vector<32x16xf32> -> vector<32x16xf32>
      %70 = arith.addf %63, %69 : vector<32x16xf32>
      %71 = arith.negf %70 : vector<32x16xf32>
      %72 = math.exp %71 : vector<32x16xf32>
      %cst_75 = arith.constant 1.000000e+00 : f32
      %73 = vector.broadcast %cst_75 : f32 to vector<32x16xf32>
      %74 = arith.addf %73, %72 : vector<32x16xf32>
      %75 = arith.divf %73, %74 : vector<32x16xf32>
      %76 = vector.shape_cast %75 : vector<32x16xf32> to vector<2x16x16xf32>
      %c0_76 = arith.constant 0 : index
      %c0_77 = arith.constant 0 : index
      %c0_78 = arith.constant 0 : index
      %77 = vector.load %arg6[%c0_76, %c0_77, %c0_78] : memref<2x16x16xf32, #tpu.memory_space<vmem>>, vector<2x16x16xf32>
      tpu.vector_store %arg6[%c0_76, %c0_77, %c0_78], %76 {strides = array<i32>} : memref<2x16x16xf32, #tpu.memory_space<vmem>>, vector<2x16x16xf32>,
    } else {
    }
    return
  }
  func.func @transform_0(%arg0: i32, %arg1: i32) -> (i32, i32, i32, i32) {
    %c0_i32 = arith.constant 0 : i32
    %c0_i32_0 = arith.constant 0 : i32
    %c0_i32_1 = arith.constant 0 : i32
    return %arg0, %arg1, %c0_i32, %c0_i32_0 : i32, i32, i32, i32
  }
  func.func @transform_1(%arg0: i32, %arg1: i32) -> (i32, i32, i32) {
    %c0_i32 = arith.constant 0 : i32
    %c0_i32_0 = arith.constant 0 : i32
    %c0_i32_1 = arith.constant 0 : i32
    %c0_i32_2 = arith.constant 0 : i32
    return %c0_i32, %c0_i32_0, %c0_i32_1 : i32, i32, i32
  }
  func.func @transform_2(%arg0: i32, %arg1: i32) -> (i32, i32, i32) {
    %c0_i32 = arith.constant 0 : i32
    %c0_i32_0 = arith.constant 0 : i32
    %c0_i32_1 = arith.constant 0 : i32
    %c0_i32_2 = arith.constant 0 : i32
    return %c0_i32, %c0_i32_0, %c0_i32_1 : i32, i32, i32
  }
  func.func @transform_3(%arg0: i32, %arg1: i32) -> i32 {
    %c0_i32 = arith.constant 0 : i32
    %c0_i32_0 = arith.constant 0 : i32
    return %c0_i32 : i32
  }
  func.func @transform_4(%arg0: i32, %arg1: i32) -> (i32, i32, i32) {
    %c0_i32 = arith.constant 0 : i32
    %c0_i32_0 = arith.constant 0 : i32
    %c0_i32_1 = arith.constant 0 : i32
    return %arg0, %c0_i32, %c0_i32_0 : i32, i32, i32
  }
}

</mosaic_0001>

<llo_original>
// kernel: tpu_custom_call.1
$region0: #{tpu_custom_call.1}
  #allocation0 [shape = 'u32[]', space=smem, size = 0x4, offset = 0x4, fixed_abs, tag = 'smem constant byte address 0x4 - core index']
  #allocation1 [shape = 'u32[144,128]{1,0:T(1,128)}', space=vmem, size = 0x12000, scoped, tag = 'internal scratch']
  #allocation2 [shape = 'f32[2,16,16]{2,1,0:T(8,128)}', space=vmem, size = 0x4000, scoped, tag = 'scratch operand']
  #allocation3 [shape = 'f32[2,16,16]{2,1,0:T(8,128)}', space=vmem, size = 0x4000, scoped, tag = 'scratch operand']
  #allocation4 [shape = 'f32[1]{0:T(128)S(6)}', space=smem, size = 0x200, scoped, tag = 'scoped memory for tpu_custom_call.1']
  #allocation9 [shape = 's32[]', space=sflag, size = 0x4, offset = 0, fixed_abs, tag = 'sflag constant byte address 0x0 - dummy sync flag']
  %s0 = inlined_call_operand.hbm [shape: f32[2,4,16,16], index: 0, kind: input, shape index: {}]
  %s1 = inlined_call_operand.vmem [shape: f32[7,32,32], index: 1, kind: input, shape index: {}]
  %s2 = inlined_call_operand.vmem [shape: f32[7,32,16], index: 2, kind: input, shape index: {}]
  %s3 = inlined_call_operand.<no memory space> [shape: f32[1], index: 3, kind: input, shape index: {}]
  %s4 = inlined_call_operand.hbm [shape: f32[2,16,16], index: 4, kind: output, shape index: {}]
  %s5 = sld [smem:[#allocation0]]
  $region61: #{tpu_custom_call.1} parent=0
    _
  %s7 = ssub.s32 1, %s5
  %s8 = scalar_select 0, %s7, %s5
  %9 = sst [smem:[#allocation4]] %s3
  $region1: #{tpu_custom_call.1} parent=0
    #allocation5 [shape = 'u8[65536]{0}', space=vmem, size = 0x10000, scoped, tag = 'input window, operand 0']
    #allocation6 [shape = 's32[2]{0}', space=sflag, size = 0x8, scoped, tag = 'scoped memory for tpu_custom_call.1']
    #allocation7 [shape = 's32[2]{0}', space=sflag, size = 0x8, scoped, tag = 'scoped memory for tpu_custom_call.1']
    #allocation8 [shape = 'u8[16384]{0}', space=vmem, size = 0x4000, scoped, tag = 'output window, operand 0, single buffered']
    %10 = vsyncpa [#allocation6], 0
    %s11 = scalar_lea.sflag [#allocation6], 1
    %12 = vsyncpa %s11, 0
    %13 = vsyncpa [#allocation7], 0
    loop: start=0, step=1, limit=4
    $region2: #{tpu_custom_call.1} parent=1 // loop_pre_header
      _
    $region3: #{tpu_custom_call.1} parent=1 // loop_header
      %s15 = sphi 0, %s19
      %p16 = scmp.ge.s32.totalorder %s15, 4
      %s22 = sphi 0, %s34
      %s23 = sphi 0, %s30
      %s24 = sphi 0, %s22
      %s25 = sphi 0, %s23
      %s26 = sphi 0, %s24
      %s27 = sphi 0, %s25
      %s39 = sphi 0, %s41
      %s42 = sphi 0, %s39
      %s43 = sphi 0, %s42
      %s59 = sphi 0, %s43
      %s63 = sphi 0, %s63
      %s65 = sphi 0, %s63
      %s66 = sphi 0, %s65
      %s80 = sphi 0, %s66
      %s84 = sphi 0, %s84
      %s86 = sphi 0, %s84
      %s87 = sphi 0, %s86
      %s101 = sphi 0, %s87
      %s105 = sphi 0, %s105
      %s107 = sphi 0, %s105
      %s108 = sphi 0, %s107
      %s122 = sphi 0, %s108
      %s128 = sphi 0, %s130
      %s131 = sphi 0, %s128
      %s132 = sphi 0, %s131
      %s148 = sphi 0, %s132
    $region4: #{tpu_custom_call.1} parent=1 // loop_header_branch
      %18 = sbr.rel (%p16) target = $region8
    $region5: #{tpu_custom_call.1} parent=1 // loop_body
      %s20 = ssub.s32 %s15, 1
      %s21 = ssub.s32 %s15, 2
      %s28 = sadd.s32 1, %s23
      %p29 = scmp.ge.s32.totalorder %s28, 2
      %s30 = scalar_select %p29, 0, %s28
      %s31 = sadd.s32 1, %s22
      %s32 = scalar_select %p29, %s31, %s22
      %p33 = scmp.ge.s32.totalorder %s32, 1
      %s34 = scalar_select %p33, 0, %s32
      %s35 = ssub.s32 %s22, %s34
      %s36 = ssub.s32 %s23, %s30
      %s37 = sor.u32 %s35, %s36
      %p38 = scmp.eq.s32.totalorder %s37, 0
      %s40 = sadd.s32 %s39, 1
      %s41 = scalar_select %p38, %s39, %s40
      %p44 = pneg %p38
      %p45 = scmp.eq.s32.totalorder %s15, 1
      %p46 = por %p44, %p45
      %p47 = scmp.ne.s32.totalorder %s39, %s42
      %p48 = scmp.eq.s32.totalorder %s15, 0
      %p49 = por %p47, %p48
      %p50 = scmp.ne.s32.totalorder %s39, %s42
      %p51 = scmp.eq.s32.totalorder %s20, 1
      %p52 = por %p50, %p51
      %p53 = scmp.ne.s32.totalorder %s42, %s43
      %p54 = scmp.eq.s32.totalorder %s20, 0
      %p55 = por %p53, %p54
      %p56 = scmp.ne.s32.totalorder %s42, %s43
      %p57 = scmp.eq.s32.totalorder %s21, 1
      %p58 = por %p56, %p57
      %p60 = scmp.ne.s32.totalorder %s43, %s59
      %p61 = scmp.eq.s32.totalorder %s21, 0
      %p62 = por %p60, %p61
      %s64 = sadd.s32 %s63, 1
      %p67 = scmp.eq.s32.totalorder %s15, 1
      %p68 = scmp.ne.s32.totalorder %s63, %s65
      %p69 = scmp.eq.s32.totalorder %s15, 0
      %p70 = por %p68, %p69
      %p71 = scmp.ne.s32.totalorder %s63, %s65
      %p72 = scmp.eq.s32.totalorder %s20, 1
      %p73 = por %p71, %p72
      %p74 = scmp.ne.s32.totalorder %s65, %s66
      %p75 = scmp.eq.s32.totalorder %s20, 0
      %p76 = por %p74, %p75
      %p77 = scmp.ne.s32.totalorder %s65, %s66
      %p78 = scmp.eq.s32.totalorder %s21, 1
      %p79 = por %p77, %p78
      %p81 = scmp.ne.s32.totalorder %s66, %s80
      %p82 = scmp.eq.s32.totalorder %s21, 0
      %p83 = por %p81, %p82
      %s85 = sadd.s32 %s84, 1
      %p88 = scmp.eq.s32.totalorder %s15, 1
      %p89 = scmp.ne.s32.totalorder %s84, %s86
      %p90 = scmp.eq.s32.totalorder %s15, 0
      %p91 = por %p89, %p90
      %p92 = scmp.ne.s32.totalorder %s84, %s86
      %p93 = scmp.eq.s32.totalorder %s20, 1
      %p94 = por %p92, %p93
      %p95 = scmp.ne.s32.totalorder %s86, %s87
      %p96 = scmp.eq.s32.totalorder %s20, 0
      %p97 = por %p95, %p96
      %p98 = scmp.ne.s32.totalorder %s86, %s87
      %p99 = scmp.eq.s32.totalorder %s21, 1
      %p100 = por %p98, %p99
      %p102 = scmp.ne.s32.totalorder %s87, %s101
      %p103 = scmp.eq.s32.totalorder %s21, 0
      %p104 = por %p102, %p103
      %s106 = sadd.s32 %s105, 1
      %p109 = scmp.eq.s32.totalorder %s15, 1
      %p110 = scmp.ne.s32.totalorder %s105, %s107
      %p111 = scmp.eq.s32.totalorder %s15, 0
      %p112 = por %p110, %p111
      %p113 = scmp.ne.s32.totalorder %s105, %s107
      %p114 = scmp.eq.s32.totalorder %s20, 1
      %p115 = por %p113, %p114
      %p116 = scmp.ne.s32.totalorder %s107, %s108
      %p117 = scmp.eq.s32.totalorder %s20, 0
      %p118 = por %p116, %p117
      %p119 = scmp.ne.s32.totalorder %s107, %s108
      %p120 = scmp.eq.s32.totalorder %s21, 1
      %p121 = por %p119, %p120
      %p123 = scmp.ne.s32.totalorder %s108, %s122
      %p124 = scmp.eq.s32.totalorder %s21, 0
      %p125 = por %p123, %p124
      %s126 = ssub.s32 %s22, %s34
      %p127 = scmp.eq.s32.totalorder %s126, 0
      %s129 = sadd.s32 %s128, 1
      %s130 = scalar_select %p127, %s128, %s129
      %p133 = pneg %p127
      %p134 = scmp.eq.s32.totalorder %s15, 1
      %p135 = por %p133, %p134
      %p136 = scmp.ne.s32.totalorder %s128, %s131
      %p137 = scmp.eq.s32.totalorder %s15, 0
      %p138 = por %p136, %p137
      %p139 = scmp.ne.s32.totalorder %s128, %s131
      %p140 = scmp.eq.s32.totalorder %s20, 1
      %p141 = por %p139, %p140
      %p142 = scmp.ne.s32.totalorder %s131, %s132
      %p143 = scmp.eq.s32.totalorder %s20, 0
      %p144 = por %p142, %p143
      %p145 = scmp.ne.s32.totalorder %s131, %s132
      %p146 = scmp.eq.s32.totalorder %s21, 1
      %p147 = por %p145, %p146
      %p149 = scmp.ne.s32.totalorder %s132, %s148
      %p150 = scmp.eq.s32.totalorder %s21, 0
      %p151 = por %p149, %p150
      %p152 = scmp.le.s32.totalorder 1, %s15
      %p153 = scmp.lt.s32.totalorder %s15, 3
      %p154 = pnand %p152, %p153
      %p155 = pneg %p154
      // Predicated region
      $region9: #{tpu_custom_call.1} parent=5 // pred_check
        _
      $region10: #{tpu_custom_call.1} parent=5 // pred_check_branch
        %157 = sbr.rel (%p154) target = $region12
      $region11: #{tpu_custom_call.1} parent=5 // pred_region
        %s158 = ssub.s32 %s15, 1
        // Predicated region
        $region13: #{tpu_custom_call.1} parent=11 // pred_check
          %p159 = pneg %p76
        $region14: #{tpu_custom_call.1} parent=11 // pred_check_branch
          %161 = sbr.rel (%p159) target = $region16
        $region15: #{tpu_custom_call.1} parent=11 // pred_region
          _
        $region16: #{tpu_custom_call.1} parent=11 // pred_fallthru
          _
        // Predicated region
        $region17: #{tpu_custom_call.1} parent=11 // pred_check
          %p162 = pneg %p97
        $region18: #{tpu_custom_call.1} parent=11 // pred_check_branch
          %164 = sbr.rel (%p162) target = $region20
        $region19: #{tpu_custom_call.1} parent=11 // pred_region
          _
        $region20: #{tpu_custom_call.1} parent=11 // pred_fallthru
          _
        // Predicated region
        $region21: #{tpu_custom_call.1} parent=11 // pred_check
          %p165 = pneg %p118
        $region22: #{tpu_custom_call.1} parent=11 // pred_check_branch
          %167 = sbr.rel (%p165) target = $region24
        $region23: #{tpu_custom_call.1} parent=11 // pred_region
          _
        $region24: #{tpu_custom_call.1} parent=11 // pred_fallthru
          _
      $region12: #{tpu_custom_call.1} parent=5 // pred_fallthru
        _
      %p168 = scmp.lt.s32.totalorder %s15, 2
      // Predicated region
      $region25: #{tpu_custom_call.1} parent=5 // pred_check
        %p169 = pneg %p168
      $region26: #{tpu_custom_call.1} parent=5 // pred_check_branch
        %171 = sbr.rel (%p169) target = $region28
      $region27: #{tpu_custom_call.1} parent=5 // pred_region
        // Predicated region
        $region29: #{tpu_custom_call.1} parent=27 // pred_check
          %p172 = pneg %p49
        $region30: #{tpu_custom_call.1} parent=27 // pred_check_branch
          %174 = sbr.rel (%p172) target = $region32
        $region31: #{tpu_custom_call.1} parent=27 // pred_region
          #allocation10 [shape = 'u32[6]{0}', space=smem, size = 0x18, scoped, tag = 'DMA stride descriptor']
          %s175 = sand.u32 %s39, 1
          %s176 = scalar_lea.sflag [#allocation6], %s175
          %s177 = sand.u32 %s39, 1
          %s178 = smul.addr %s177, 64
          %s179 = scalar_lea.vmem [#allocation5], %s178
          %s180 = smul.u32 2, %s22
          %s181 = smul.u32 2, %s23
          %s183 = ssub.s32 1024, 1024
          %184 = vsyncadd %s176, %s183
          %s185 = smul.addr %s181, 2
          %s186 = smul.addr %s180, 8
          %s187 = sadd.s32 %s185, %s186
          %s188 = smul.addr %s187, 128
          %s189 = scalar_lea.hbm %s0, %s188
          %s191 = sshll.u32 1, 14
          %s192 = sxor.u32 4294967295, %s191
          %s194 = sld [smem:[#allocation0]]
          %s195 = sadd.s32 2, %s194
          %s197 = sshll.u32 7, 26
          %s198 = sxor.u32 4294967295, %s197
          %s199 = sand.u32 0, %s198
          %s200 = sshll.u32 %s195, 26
          %s201 = sor.u32 %s199, %s200
          %s202 = sshll.u32 %s179, 4
          %s203 = int_to_ptr.vmem [resolvable:$true] %s202
          %209 = sst [smem:[#allocation10]] 1024
          %s210 = scalar_lea.smem [#allocation10], 1
          %211 = sst [smem:[%s210]] 512
          %s212 = scalar_lea.smem [#allocation10], 2
          %213 = sst [smem:[%s212]] 4
          %s214 = scalar_lea.smem [#allocation10], 3
          %215 = sst [smem:[%s214]] 128
          %s216 = scalar_lea.smem [#allocation10], 4
          %217 = sst [smem:[%s216]] 128
          %s218 = scalar_lea.smem [#allocation10], 5
          %219 = sst [smem:[%s218]] 8
          %221 = dma.general %s189, 1024, %s203, %s176, [#allocation9], [#allocation10], %s201, 0
        $region32: #{tpu_custom_call.1} parent=27 // pred_fallthru
          _
      $region28: #{tpu_custom_call.1} parent=5 // pred_fallthru
        _
      %p222 = scmp.le.s32.totalorder 1, %s15
      %p223 = scmp.lt.s32.totalorder %s15, 3
      %p224 = pnand %p222, %p223
      %p225 = pneg %p224
      // Predicated region
      $region33: #{tpu_custom_call.1} parent=5 // pred_check
        _
      $region34: #{tpu_custom_call.1} parent=5 // pred_check_branch
        %227 = sbr.rel (%p224) target = $region36
      $region35: #{tpu_custom_call.1} parent=5 // pred_region
        %s228 = ssub.s32 %s15, 1
        %s229 = sand.u32 %s42, 1
        %s230 = scalar_lea.sflag [#allocation6], %s229
        %s231 = sand.u32 %s42, 1
        %s232 = smul.addr %s231, 64
        %s233 = scalar_lea.vmem [#allocation5], %s232
        // Predicated region
        $region37: #{tpu_custom_call.1} parent=35 // pred_check
          %p234 = pneg %p55
        $region38: #{tpu_custom_call.1} parent=35 // pred_check_branch
          %236 = sbr.rel (%p234) target = $region40
        $region39: #{tpu_custom_call.1} parent=35 // pred_region
          %237 = dma.done %s230, 1024
        $region40: #{tpu_custom_call.1} parent=35 // pred_fallthru
          _
        %s238 = sand.u32 %s42, 1
        %s239 = scalar_lea.sflag [#allocation6], %s238
        %s240 = sand.u32 %s42, 1
        %s241 = smul.addr %s240, 64
        %s242 = scalar_lea.vmem [#allocation5], %s241
        %p243 = pneg %p55
        %p244 = pneg %p52
        %p245 = pneg %p76
        %p246 = pneg %p73
        %p247 = pneg %p97
        %p248 = pneg %p94
        %p249 = pneg %p118
        %p250 = pneg %p115
        %p251 = pneg %p144
        %p252 = pneg %p141
        %s253 = smul.u32 2, %s24
        %s254 = smul.u32 2, %s25
        %s255 = smul.u32 2, %s24
        %p256 = scmp.eq.s32.totalorder %s25, 0
        // Predicated region
        $region41: #{tpu_custom_call.1} parent=35 // pred_check
          %p257 = pneg %p256
        $region42: #{tpu_custom_call.1} parent=35 // pred_check_branch
          %259 = sbr.rel (%p257) target = $region44
        $region43: #{tpu_custom_call.1} parent=35 // pred_region
          %vm260 = vcmask 130048
          %261 = vst.msk [vmem:[#allocation2] sm:$0xff] %vm260, 0.0
          %262 = vst.msk [vmem:[#allocation2 + $0x8] sm:$0xff] %vm260, 0.0
          %263 = vst.msk [vmem:[#allocation2 + $0x10] sm:$0xff] %vm260, 0.0
          %264 = vst.msk [vmem:[#allocation2 + $0x18] sm:$0xff] %vm260, 0.0
          %265 = vst.msk [vmem:[#allocation3] sm:$0xff] %vm260, -inf
          %266 = vst.msk [vmem:[#allocation3 + $0x8] sm:$0xff] %vm260, -inf
          %267 = vst.msk [vmem:[#allocation3 + $0x10] sm:$0xff] %vm260, -inf
          %268 = vst.msk [vmem:[#allocation3 + $0x18] sm:$0xff] %vm260, -inf
        $region44: #{tpu_custom_call.1} parent=35 // pred_fallthru
          _
        %v269 = vld [vmem:[%s233] sm:$0xff]
        %v270 = vld [vmem:[%s233 + $0x8] sm:$0xff]
        %v271 = vld [vmem:[%s233 + $0x10] sm:$0xff]
        %v272 = vld [vmem:[%s233 + $0x18] sm:$0xff]
        %v273 = vld [vmem:[%s233 + $0x20] sm:$0xff]
        %v274 = vld [vmem:[%s233 + $0x28] sm:$0xff]
        %v275 = vld [vmem:[%s233 + $0x30] sm:$0xff]
        %v276 = vld [vmem:[%s233 + $0x38] sm:$0xff]
        %v277 = vld [vmem:[#allocation2] sm:$0xff]
        %v278 = vld [vmem:[#allocation2 + $0x8] sm:$0xff]
        %v279 = vld [vmem:[#allocation2 + $0x10] sm:$0xff]
        %v280 = vld [vmem:[#allocation2 + $0x18] sm:$0xff]
        %vm281 = vcmask 130048
        %v282 = vsel %vm281, %v269, 0.0
        %v283 = vsel %vm281, %v271, 0.0
        %v284 = vadd.f32 %v282, %v283
        %v285 = vsel %vm281, %v270, 0.0
        %v286 = vsel %vm281, %v272, 0.0
        %v287 = vadd.f32 %v285, %v286
        %v288 = vsel %vm281, %v273, 0.0
        %v289 = vsel %vm281, %v275, 0.0
        %v290 = vadd.f32 %v288, %v289
        %v291 = vsel %vm281, %v274, 0.0
        %v292 = vsel %vm281, %v276, 0.0
        %v293 = vadd.f32 %v291, %v292
        %v294 = vadd.f32 %v277, %v284
        %v295 = vadd.f32 %v278, %v287
        %v296 = vadd.f32 %v279, %v290
        %v297 = vadd.f32 %v280, %v293
        %298 = vst.msk [vmem:[#allocation2] sm:$0xff] %vm281, %v294
        %299 = vst.msk [vmem:[#allocation2 + $0x8] sm:$0xff] %vm281, %v295
        %300 = vst.msk [vmem:[#allocation2 + $0x10] sm:$0xff] %vm281, %v296
        %301 = vst.msk [vmem:[#allocation2 + $0x18] sm:$0xff] %vm281, %v297
        %v302 = vld [vmem:[#allocation3] sm:$0xff]
        %v303 = vld [vmem:[#allocation3 + $0x8] sm:$0xff]
        %v304 = vld [vmem:[#allocation3 + $0x10] sm:$0xff]
        %v305 = vld [vmem:[#allocation3 + $0x18] sm:$0xff]
        %v306 = vsel %vm281, %v269, -inf
        %v307 = vsel %vm281, %v271, -inf
        %v308 = vmax.f32 %v306, %v307
        %v309 = vsel %vm281, %v270, -inf
        %v310 = vsel %vm281, %v272, -inf
        %v311 = vmax.f32 %v309, %v310
        %v312 = vsel %vm281, %v273, -inf
        %v313 = vsel %vm281, %v275, -inf
        %v314 = vmax.f32 %v312, %v313
        %v315 = vsel %vm281, %v274, -inf
        %v316 = vsel %vm281, %v276, -inf
        %v317 = vmax.f32 %v315, %v316
        %v318 = vmax.f32 %v302, %v308
        %v319 = vmax.f32 %v303, %v311
        %v320 = vmax.f32 %v304, %v314
        %v321 = vmax.f32 %v305, %v317
        %322 = vst.msk [vmem:[#allocation3] sm:$0xff] %vm281, %v318
        %323 = vst.msk [vmem:[#allocation3 + $0x8] sm:$0xff] %vm281, %v319
        %324 = vst.msk [vmem:[#allocation3 + $0x10] sm:$0xff] %vm281, %v320
        %325 = vst.msk [vmem:[#allocation3 + $0x18] sm:$0xff] %vm281, %v321
        %p326 = scmp.eq.s32.totalorder %s25, 1
        // Predicated region
        $region45: #{tpu_custom_call.1} parent=35 // pred_check
          %p327 = pneg %p326
        $region46: #{tpu_custom_call.1} parent=35 // pred_check_branch
          %329 = sbr.rel (%p327) target = $region48
        $region47: #{tpu_custom_call.1} parent=35 // pred_region
          %v330 = vld [vmem:[#allocation2] sm:$0xff]
          %v331 = vld [vmem:[#allocation2 + $0x8] sm:$0xff]
          %v332 = vld [vmem:[#allocation2 + $0x10] sm:$0xff]
          %v333 = vld [vmem:[#allocation2 + $0x18] sm:$0xff]
          %v334 = vld [vmem:[#allocation3] sm:$0xff]
          %v335 = vld [vmem:[#allocation3 + $0x8] sm:$0xff]
          %v336 = vld [vmem:[#allocation3 + $0x10] sm:$0xff]
          %v337 = vld [vmem:[#allocation3 + $0x18] sm:$0xff]
          %342 = vrot.lane.b32.xlu0 %v334, 16
          %v343 = vpop.permute.xlu0 %342
          %344 = vrot.lane.b32.xlu0 %v335, 16
          %v345 = vpop.permute.xlu0 %344
          %346 = vrot.lane.b32.xlu0 %v336, 16
          %v347 = vpop.permute.xlu0 %346
          %348 = vrot.lane.b32.xlu0 %v337, 16
          %v349 = vpop.permute.xlu0 %348
          %v354 = vsel %vm281, %v330, %v343
          %v355 = vsel %vm281, %v331, %v345
          %v356 = vsel %vm281, %v332, %v347
          %v357 = vsel %vm281, %v333, %v349
          %s358 = sld [smem:[#allocation4]]
          %v359 = vstv %s358
          %v360 = vld [vmem:[%s2] sm:$0xff]
          %v361 = vld [vmem:[%s2 + $0x8] sm:$0xff]
          %v362 = vld [vmem:[%s2 + $0x10] sm:$0xff]
          %v363 = vld [vmem:[%s2 + $0x18] sm:$0xff]
          %vm364 = vcmask 261120
          %v366 = vsel %vm364, %v354, 0
          %v369 = vsel %vm364, %v355, 0
          %v372 = vsel %vm364, %v356, 0
          %v375 = vsel %vm364, %v357, 0
          %377 = vmatprep.subr.mxu0 0.0
          %378 = vmatpush1.msra.mxu0 %v360
          %379 = vmatprep.subr.mxu0 0.0
          %380 = vmatpush1.msra.mxu0 %v361
          %381 = vmatprep.subr.mxu0 0.0
          %382 = vmatpush1.msra.mxu0 %v362
          %383 = vmatprep.subr.mxu0 0.0
          %384 = vmatpush1.msra.mxu0 %v363
          %385 = vmatprep.subr.mxu0 0.0
          %386 = vmatpush1.msra.mxu0 0.0
          %387 = vmatprep.subr.mxu0 0.0
          %388 = vmatpush1.msra.mxu0 0.0
          %389 = vmatprep.subr.mxu0 0.0
          %390 = vmatpush1.msra.mxu0 0.0
          %391 = vmatprep.subr.mxu0 0.0
          %392 = vmatpush1.msra.mxu0 0.0
          %393 = vmatprep.subr.mxu0 0.0
          %394 = vmatpush1.msra.mxu0 0.0
          %395 = vmatprep.subr.mxu0 0.0
          %396 = vmatpush1.msra.mxu0 0.0
          %397 = vmatprep.subr.mxu0 0.0
          %398 = vmatpush1.msra.mxu0 0.0
          %399 = vmatprep.subr.mxu0 0.0
          %400 = vmatpush1.msra.mxu0 0.0
          %401 = vmatprep.subr.mxu0 0.0
          %402 = vmatpush1.msra.mxu0 0.0
          %403 = vmatprep.subr.mxu0 0.0
          %404 = vmatpush1.msra.mxu0 0.0
          %405 = vmatprep.subr.mxu0 0.0
          %406 = vmatpush1.msra.mxu0 0.0
          %407 = vmatprep.subr.mxu0 0.0
          %408 = vmatpush1.msra.mxu0 0.0
          %409 = vmatprep.subr.mxu0 0.0
          %410 = vmatpush1.msra.mxu0 0.0
          %411 = vmatprep.subr.mxu0 0.0
          %412 = vmatpush1.msra.mxu0 0.0
          %413 = vmatprep.subr.mxu0 0.0
          %414 = vmatpush1.msra.mxu0 0.0
          %415 = vmatprep.subr.mxu0 0.0
          %416 = vmatpush1.msra.mxu0 0.0
          %417 = vmatprep.subr.mxu0 0.0
          %418 = vmatpush1.msra.mxu0 0.0
          %419 = vmatprep.subr.mxu0 0.0
          %420 = vmatpush1.msra.mxu0 0.0
          %421 = vmatprep.subr.mxu0 0.0
          %422 = vmatpush1.msra.mxu0 0.0
          %423 = vmatprep.subr.mxu0 0.0
          %424 = vmatpush1.msra.mxu0 0.0
          %425 = vmatprep.subr.mxu0 0.0
          %426 = vmatpush1.msra.mxu0 0.0
          %427 = vmatprep.subr.mxu0 0.0
          %428 = vmatpush1.msra.mxu0 0.0
          %429 = vmatprep.subr.mxu0 0.0
          %430 = vmatpush1.msra.mxu0 0.0
          %431 = vmatprep.subr.mxu0 0.0
          %432 = vmatpush1.msra.mxu0 0.0
          %433 = vmatprep.subr.mxu0 0.0
          %434 = vmatpush1.msra.mxu0 0.0
          %435 = vmatprep.subr.mxu0 0.0
          %436 = vmatpush1.msra.mxu0 0.0
          %437 = vmatprep.subr.mxu0 0.0
          %438 = vmatpush1.msra.mxu0 0.0
          %439 = vmatprep.subr.mxu0 0.0
          %440 = vmatpush1.msra.mxu0 0.0
          %441 = vmatprep.mubr.f32.mxu0 0.0
          %442 = vmatmul.mubr.f32.gmra.mrb[0].mxu0 %v366
          %v443 = vpop.f32.mrb[0].mxu0
          %v444 = vadd.f32 0.0, %v443
          %v445 = vpop.f32.mrb[0].mxu0
          %446 = vmatprep.mubr.f32.mxu0 0.0
          %447 = vmatmul.mubr.f32.gmra.mrb[0].mxu0 %v369
          %v448 = vpop.f32.mrb[0].mxu0
          %v449 = vadd.f32 0.0, %v448
          %v450 = vpop.f32.mrb[0].mxu0
          %451 = vmatprep.mubr.f32.mxu0 0.0
          %452 = vmatmul.mubr.f32.gmra.mrb[0].mxu0 %v372
          %v453 = vpop.f32.mrb[0].mxu0
          %v454 = vadd.f32 0.0, %v453
          %v455 = vpop.f32.mrb[0].mxu0
          %456 = vmatprep.mubr.f32.mxu0 0.0
          %457 = vmatmul.mubr.f32.gmra.mrb[0].mxu0 %v375
          %v458 = vpop.f32.mrb[0].mxu0
          %v459 = vadd.f32 0.0, %v458
          %v460 = vpop.f32.mrb[0].mxu0
          %461 = vdwg.mxu0
          %v462 = vld [vmem:[%s1] sm:$0xff]
          %v463 = vld [vmem:[%s1 + $0x8] sm:$0xff]
          %v464 = vld [vmem:[%s1 + $0x10] sm:$0xff]
          %v465 = vld [vmem:[%s1 + $0x18] sm:$0xff]
          %v467 = vsel %vm364, %v462, 0
          %v470 = vsel %vm364, %v463, 0
          %v473 = vsel %vm364, %v464, 0
          %v476 = vsel %vm364, %v465, 0
          %478 = vmatprep.subr.mxu0 0.0
          %479 = vmatpush1.msra.mxu0 %v444
          %480 = vmatprep.subr.mxu0 0.0
          %481 = vmatpush1.msra.mxu0 %v449
          %482 = vmatprep.subr.mxu0 0.0
          %483 = vmatpush1.msra.mxu0 %v454
          %484 = vmatprep.subr.mxu0 0.0
          %485 = vmatpush1.msra.mxu0 %v459
          %486 = vmatprep.subr.mxu0 0.0
          %487 = vmatpush1.msra.mxu0 0.0
          %488 = vmatprep.subr.mxu0 0.0
          %489 = vmatpush1.msra.mxu0 0.0
          %490 = vmatprep.subr.mxu0 0.0
          %491 = vmatpush1.msra.mxu0 0.0
          %492 = vmatprep.subr.mxu0 0.0
          %493 = vmatpush1.msra.mxu0 0.0
          %494 = vmatprep.subr.mxu0 0.0
          %495 = vmatpush1.msra.mxu0 0.0
          %496 = vmatprep.subr.mxu0 0.0
          %497 = vmatpush1.msra.mxu0 0.0
          %498 = vmatprep.subr.mxu0 0.0
          %499 = vmatpush1.msra.mxu0 0.0
          %500 = vmatprep.subr.mxu0 0.0
          %501 = vmatpush1.msra.mxu0 0.0
          %502 = vmatprep.subr.mxu0 0.0
          %503 = vmatpush1.msra.mxu0 0.0
          %504 = vmatprep.subr.mxu0 0.0
          %505 = vmatpush1.msra.mxu0 0.0
          %506 = vmatprep.subr.mxu0 0.0
          %507 = vmatpush1.msra.mxu0 0.0
          %508 = vmatprep.subr.mxu0 0.0
          %509 = vmatpush1.msra.mxu0 0.0
          %510 = vmatprep.subr.mxu0 0.0
          %511 = vmatpush1.msra.mxu0 0.0
          %512 = vmatprep.subr.mxu0 0.0
          %513 = vmatpush1.msra.mxu0 0.0
          %514 = vmatprep.subr.mxu0 0.0
          %515 = vmatpush1.msra.mxu0 0.0
          %516 = vmatprep.subr.mxu0 0.0
          %517 = vmatpush1.msra.mxu0 0.0
          %518 = vmatprep.subr.mxu0 0.0
          %519 = vmatpush1.msra.mxu0 0.0
          %520 = vmatprep.subr.mxu0 0.0
          %521 = vmatpush1.msra.mxu0 0.0
          %522 = vmatprep.subr.mxu0 0.0
          %523 = vmatpush1.msra.mxu0 0.0
          %524 = vmatprep.subr.mxu0 0.0
          %525 = vmatpush1.msra.mxu0 0.0
          %526 = vmatprep.subr.mxu0 0.0
          %527 = vmatpush1.msra.mxu0 0.0
          %528 = vmatprep.subr.mxu0 0.0
          %529 = vmatpush1.msra.mxu0 0.0
          %530 = vmatprep.subr.mxu0 0.0
          %531 = vmatpush1.msra.mxu0 0.0
          %532 = vmatprep.subr.mxu0 0.0
          %533 = vmatpush1.msra.mxu0 0.0
          %534 = vmatprep.subr.mxu0 0.0
          %535 = vmatpush1.msra.mxu0 0.0
          %536 = vmatprep.subr.mxu0 0.0
          %537 = vmatpush1.msra.mxu0 0.0
          %538 = vmatprep.subr.mxu0 0.0
          %539 = vmatpush1.msra.mxu0 0.0
          %540 = vmatprep.subr.mxu0 0.0
          %541 = vmatpush1.msra.mxu0 0.0
          %542 = vmatprep.mubr.f32.mxu0 0.0
          %543 = vmatmul.mubr.f32.gmra.mrb[0].mxu0 %v467
          %v544 = vpop.f32.mrb[0].mxu0
          %v545 = vadd.f32 0.0, %v544
          %v546 = vpop.f32.mrb[0].mxu0
          %547 = vmatprep.mubr.f32.mxu0 0.0
          %548 = vmatmul.mubr.f32.gmra.mrb[0].mxu0 %v470
          %v549 = vpop.f32.mrb[0].mxu0
          %v550 = vadd.f32 0.0, %v549
          %v551 = vpop.f32.mrb[0].mxu0
          %552 = vmatprep.mubr.f32.mxu0 0.0
          %553 = vmatmul.mubr.f32.gmra.mrb[0].mxu0 %v473
          %v554 = vpop.f32.mrb[0].mxu0
          %v555 = vadd.f32 0.0, %v554
          %v556 = vpop.f32.mrb[0].mxu0
          %557 = vmatprep.mubr.f32.mxu0 0.0
          %558 = vmatmul.mubr.f32.gmra.mrb[0].mxu0 %v476
          %v559 = vpop.f32.mrb[0].mxu0
          %v560 = vadd.f32 0.0, %v559
          %v561 = vpop.f32.mrb[0].mxu0
          %562 = vdwg.mxu0
          %v563 = vadd.f32 %v359, %v545
          %v564 = vadd.f32 %v359, %v550
          %v565 = vadd.f32 %v359, %v555
          %v566 = vadd.f32 %v359, %v560
          %s567 = scalar_lea.vmem %s2, 32
          %v568 = vld [vmem:[%s567] sm:$0xff]
          %v569 = vld [vmem:[%s567 + $0x8] sm:$0xff]
          %v570 = vld [vmem:[%s567 + $0x10] sm:$0xff]
          %v571 = vld [vmem:[%s567 + $0x18] sm:$0xff]
          %572 = vmatprep.subr.mxu0 0.0
          %573 = vmatpush1.msra.mxu0 %v568
          %574 = vmatprep.subr.mxu0 0.0
          %575 = vmatpush1.msra.mxu0 %v569
          %576 = vmatprep.subr.mxu0 0.0
          %577 = vmatpush1.msra.mxu0 %v570
          %578 = vmatprep.subr.mxu0 0.0
          %579 = vmatpush1.msra.mxu0 %v571
          %580 = vmatprep.subr.mxu0 0.0
          %581 = vmatpush1.msra.mxu0 0.0
          %582 = vmatprep.subr.mxu0 0.0
          %583 = vmatpush1.msra.mxu0 0.0
          %584 = vmatprep.subr.mxu0 0.0
          %585 = vmatpush1.msra.mxu0 0.0
          %586 = vmatprep.subr.mxu0 0.0
          %587 = vmatpush1.msra.mxu0 0.0
          %588 = vmatprep.subr.mxu0 0.0
          %589 = vmatpush1.msra.mxu0 0.0
          %590 = vmatprep.subr.mxu0 0.0
          %591 = vmatpush1.msra.mxu0 0.0
          %592 = vmatprep.subr.mxu0 0.0
          %593 = vmatpush1.msra.mxu0 0.0
          %594 = vmatprep.subr.mxu0 0.0
          %595 = vmatpush1.msra.mxu0 0.0
          %596 = vmatprep.subr.mxu0 0.0
          %597 = vmatpush1.msra.mxu0 0.0
          %598 = vmatprep.subr.mxu0 0.0
          %599 = vmatpush1.msra.mxu0 0.0
          %600 = vmatprep.subr.mxu0 0.0
          %601 = vmatpush1.msra.mxu0 0.0
          %602 = vmatprep.subr.mxu0 0.0
          %603 = vmatpush1.msra.mxu0 0.0
          %604 = vmatprep.subr.mxu0 0.0
          %605 = vmatpush1.msra.mxu0 0.0
          %606 = vmatprep.subr.mxu0 0.0
          %607 = vmatpush1.msra.mxu0 0.0
          %608 = vmatprep.subr.mxu0 0.0
          %609 = vmatpush1.msra.mxu0 0.0
          %610 = vmatprep.subr.mxu0 0.0
          %611 = vmatpush1.msra.mxu0 0.0
          %612 = vmatprep.subr.mxu0 0.0
          %613 = vmatpush1.msra.mxu0 0.0
          %614 = vmatprep.subr.mxu0 0.0
          %615 = vmatpush1.msra.mxu0 0.0
          %616 = vmatprep.subr.mxu0 0.0
          %617 = vmatpush1.msra.mxu0 0.0
          %618 = vmatprep.subr.mxu0 0.0
          %619 = vmatpush1.msra.mxu0 0.0
          %620 = vmatprep.subr.mxu0 0.0
          %621 = vmatpush1.msra.mxu0 0.0
          %622 = vmatprep.subr.mxu0 0.0
          %623 = vmatpush1.msra.mxu0 0.0
          %624 = vmatprep.subr.mxu0 0.0
          %625 = vmatpush1.msra.mxu0 0.0
          %626 = vmatprep.subr.mxu0 0.0
          %627 = vmatpush1.msra.mxu0 0.0
          %628 = vmatprep.subr.mxu0 0.0
          %629 = vmatpush1.msra.mxu0 0.0
          %630 = vmatprep.subr.mxu0 0.0
          %631 = vmatpush1.msra.mxu0 0.0
          %632 = vmatprep.subr.mxu0 0.0
          %633 = vmatpush1.msra.mxu0 0.0
          %634 = vmatprep.subr.mxu0 0.0
          %635 = vmatpush1.msra.mxu0 0.0
          %636 = vmatprep.mubr.f32.mxu0 0.0
          %637 = vmatmul.mubr.f32.gmra.mrb[0].mxu0 %v366
          %v638 = vpop.f32.mrb[0].mxu0
          %v639 = vadd.f32 0.0, %v638
          %v640 = vpop.f32.mrb[0].mxu0
          %641 = vmatprep.mubr.f32.mxu0 0.0
          %642 = vmatmul.mubr.f32.gmra.mrb[0].mxu0 %v369
          %v643 = vpop.f32.mrb[0].mxu0
          %v644 = vadd.f32 0.0, %v643
          %v645 = vpop.f32.mrb[0].mxu0
          %646 = vmatprep.mubr.f32.mxu0 0.0
          %647 = vmatmul.mubr.f32.gmra.mrb[0].mxu0 %v372
          %v648 = vpop.f32.mrb[0].mxu0
          %v649 = vadd.f32 0.0, %v648
          %v650 = vpop.f32.mrb[0].mxu0
          %651 = vmatprep.mubr.f32.mxu0 0.0
          %652 = vmatmul.mubr.f32.gmra.mrb[0].mxu0 %v375
          %v653 = vpop.f32.mrb[0].mxu0
          %v654 = vadd.f32 0.0, %v653
          %v655 = vpop.f32.mrb[0].mxu0
          %656 = vdwg.mxu0
          %s657 = scalar_lea.vmem %s1, 32
          %v658 = vld [vmem:[%s657] sm:$0xff]
          %v659 = vld [vmem:[%s657 + $0x8] sm:$0xff]
          %v660 = vld [vmem:[%s657 + $0x10] sm:$0xff]
          %v661 = vld [vmem:[%s657 + $0x18] sm:$0xff]
          %v663 = vsel %vm364, %v658, 0
          %v666 = vsel %vm364, %v659, 0
          %v669 = vsel %vm364, %v660, 0
          %v672 = vsel %vm364, %v661, 0
          %674 = vmatprep.subr.mxu0 0.0
          %675 = vmatpush1.msra.mxu0 %v639
          %676 = vmatprep.subr.mxu0 0.0
          %677 = vmatpush1.msra.mxu0 %v644
          %678 = vmatprep.subr.mxu0 0.0
          %679 = vmatpush1.msra.mxu0 %v649
          %680 = vmatprep.subr.mxu0 0.0
          %681 = vmatpush1.msra.mxu0 %v654
          %682 = vmatprep.subr.mxu0 0.0
          %683 = vmatpush1.msra.mxu0 0.0
          %684 = vmatprep.subr.mxu0 0.0
          %685 = vmatpush1.msra.mxu0 0.0
          %686 = vmatprep.subr.mxu0 0.0
          %687 = vmatpush1.msra.mxu0 0.0
          %688 = vmatprep.subr.mxu0 0.0
          %689 = vmatpush1.msra.mxu0 0.0
          %690 = vmatprep.subr.mxu0 0.0
          %691 = vmatpush1.msra.mxu0 0.0
          %692 = vmatprep.subr.mxu0 0.0
          %693 = vmatpush1.msra.mxu0 0.0
          %694 = vmatprep.subr.mxu0 0.0
          %695 = vmatpush1.msra.mxu0 0.0
          %696 = vmatprep.subr.mxu0 0.0
          %697 = vmatpush1.msra.mxu0 0.0
          %698 = vmatprep.subr.mxu0 0.0
          %699 = vmatpush1.msra.mxu0 0.0
          %700 = vmatprep.subr.mxu0 0.0
          %701 = vmatpush1.msra.mxu0 0.0
          %702 = vmatprep.subr.mxu0 0.0
          %703 = vmatpush1.msra.mxu0 0.0
          %704 = vmatprep.subr.mxu0 0.0
          %705 = vmatpush1.msra.mxu0 0.0
          %706 = vmatprep.subr.mxu0 0.0
          %707 = vmatpush1.msra.mxu0 0.0
          %708 = vmatprep.subr.mxu0 0.0
          %709 = vmatpush1.msra.mxu0 0.0
          %710 = vmatprep.subr.mxu0 0.0
          %711 = vmatpush1.msra.mxu0 0.0
          %712 = vmatprep.subr.mxu0 0.0
          %713 = vmatpush1.msra.mxu0 0.0
          %714 = vmatprep.subr.mxu0 0.0
          %715 = vmatpush1.msra.mxu0 0.0
          %716 = vmatprep.subr.mxu0 0.0
          %717 = vmatpush1.msra.mxu0 0.0
          %718 = vmatprep.subr.mxu0 0.0
          %719 = vmatpush1.msra.mxu0 0.0
          %720 = vmatprep.subr.mxu0 0.0
          %721 = vmatpush1.msra.mxu0 0.0
          %722 = vmatprep.subr.mxu0 0.0
          %723 = vmatpush1.msra.mxu0 0.0
          %724 = vmatprep.subr.mxu0 0.0
          %725 = vmatpush1.msra.mxu0 0.0
          %726 = vmatprep.subr.mxu0 0.0
          %727 = vmatpush1.msra.mxu0 0.0
          %728 = vmatprep.subr.mxu0 0.0
          %729 = vmatpush1.msra.mxu0 0.0
          %730 = vmatprep.subr.mxu0 0.0
          %731 = vmatpush1.msra.mxu0 0.0
          %732 = vmatprep.subr.mxu0 0.0
          %733 = vmatpush1.msra.mxu0 0.0
          %734 = vmatprep.subr.mxu0 0.0
          %735 = vmatpush1.msra.mxu0 0.0
          %736 = vmatprep.subr.mxu0 0.0
          %737 = vmatpush1.msra.mxu0 0.0
          %738 = vmatprep.mubr.f32.mxu0 0.0
          %739 = vmatmul.mubr.f32.gmra.mrb[0].mxu0 %v663
          %v740 = vpop.f32.mrb[0].mxu0
          %v741 = vadd.f32 0.0, %v740
          %v742 = vpop.f32.mrb[0].mxu0
          %743 = vmatprep.mubr.f32.mxu0 0.0
          %744 = vmatmul.mubr.f32.gmra.mrb[0].mxu0 %v666
          %v745 = vpop.f32.mrb[0].mxu0
          %v746 = vadd.f32 0.0, %v745
          %v747 = vpop.f32.mrb[0].mxu0
          %748 = vmatprep.mubr.f32.mxu0 0.0
          %749 = vmatmul.mubr.f32.gmra.mrb[0].mxu0 %v669
          %v750 = vpop.f32.mrb[0].mxu0
          %v751 = vadd.f32 0.0, %v750
          %v752 = vpop.f32.mrb[0].mxu0
          %753 = vmatprep.mubr.f32.mxu0 0.0
          %754 = vmatmul.mubr.f32.gmra.mrb[0].mxu0 %v672
          %v755 = vpop.f32.mrb[0].mxu0
          %v756 = vadd.f32 0.0, %v755
          %v757 = vpop.f32.mrb[0].mxu0
          %758 = vdwg.mxu0
          %v759 = vadd.f32 %v563, %v741
          %v760 = vadd.f32 %v564, %v746
          %v761 = vadd.f32 %v565, %v751
          %v762 = vadd.f32 %v566, %v756
          %s763 = scalar_lea.vmem %s2, 64
          %v764 = vld [vmem:[%s763] sm:$0xff]
          %v765 = vld [vmem:[%s763 + $0x8] sm:$0xff]
          %v766 = vld [vmem:[%s763 + $0x10] sm:$0xff]
          %v767 = vld [vmem:[%s763 + $0x18] sm:$0xff]
          %768 = vmatprep.subr.mxu0 0.0
          %769 = vmatpush1.msra.mxu0 %v764
          %770 = vmatprep.subr.mxu0 0.0
          %771 = vmatpush1.msra.mxu0 %v765
          %772 = vmatprep.subr.mxu0 0.0
          %773 = vmatpush1.msra.mxu0 %v766
          %774 = vmatprep.subr.mxu0 0.0
          %775 = vmatpush1.msra.mxu0 %v767
          %776 = vmatprep.subr.mxu0 0.0
          %777 = vmatpush1.msra.mxu0 0.0
          %778 = vmatprep.subr.mxu0 0.0
          %779 = vmatpush1.msra.mxu0 0.0
          %780 = vmatprep.subr.mxu0 0.0
          %781 = vmatpush1.msra.mxu0 0.0
          %782 = vmatprep.subr.mxu0 0.0
          %783 = vmatpush1.msra.mxu0 0.0
          %784 = vmatprep.subr.mxu0 0.0
          %785 = vmatpush1.msra.mxu0 0.0
          %786 = vmatprep.subr.mxu0 0.0
          %787 = vmatpush1.msra.mxu0 0.0
          %788 = vmatprep.subr.mxu0 0.0
          %789 = vmatpush1.msra.mxu0 0.0
          %790 = vmatprep.subr.mxu0 0.0
          %791 = vmatpush1.msra.mxu0 0.0
          %792 = vmatprep.subr.mxu0 0.0
          %793 = vmatpush1.msra.mxu0 0.0
          %794 = vmatprep.subr.mxu0 0.0
          %795 = vmatpush1.msra.mxu0 0.0
          %796 = vmatprep.subr.mxu0 0.0
          %797 = vmatpush1.msra.mxu0 0.0
          %798 = vmatprep.subr.mxu0 0.0
          %799 = vmatpush1.msra.mxu0 0.0
          %800 = vmatprep.subr.mxu0 0.0
          %801 = vmatpush1.msra.mxu0 0.0
          %802 = vmatprep.subr.mxu0 0.0
          %803 = vmatpush1.msra.mxu0 0.0
          %804 = vmatprep.subr.mxu0 0.0
          %805 = vmatpush1.msra.mxu0 0.0
          %806 = vmatprep.subr.mxu0 0.0
          %807 = vmatpush1.msra.mxu0 0.0
          %808 = vmatprep.subr.mxu0 0.0
          %809 = vmatpush1.msra.mxu0 0.0
          %810 = vmatprep.subr.mxu0 0.0
          %811 = vmatpush1.msra.mxu0 0.0
          %812 = vmatprep.subr.mxu0 0.0
          %813 = vmatpush1.msra.mxu0 0.0
          %814 = vmatprep.subr.mxu0 0.0
          %815 = vmatpush1.msra.mxu0 0.0
          %816 = vmatprep.subr.mxu0 0.0
          %817 = vmatpush1.msra.mxu0 0.0
          %818 = vmatprep.subr.mxu0 0.0
          %819 = vmatpush1.msra.mxu0 0.0
          %820 = vmatprep.subr.mxu0 0.0
          %821 = vmatpush1.msra.mxu0 0.0
          %822 = vmatprep.subr.mxu0 0.0
          %823 = vmatpush1.msra.mxu0 0.0
          %824 = vmatprep.subr.mxu0 0.0
          %825 = vmatpush1.msra.mxu0 0.0
          %826 = vmatprep.subr.mxu0 0.0
          %827 = vmatpush1.msra.mxu0 0.0
          %828 = vmatprep.subr.mxu0 0.0
          %829 = vmatpush1.msra.mxu0 0.0
          %830 = vmatprep.subr.mxu0 0.0
          %831 = vmatpush1.msra.mxu0 0.0
          %832 = vmatprep.mubr.f32.mxu0 0.0
          %833 = vmatmul.mubr.f32.gmra.mrb[0].mxu0 %v366
          %v834 = vpop.f32.mrb[0].mxu0
          %v835 = vadd.f32 0.0, %v834
          %v836 = vpop.f32.mrb[0].mxu0
          %837 = vmatprep.mubr.f32.mxu0 0.0
          %838 = vmatmul.mubr.f32.gmra.mrb[0].mxu0 %v369
          %v839 = vpop.f32.mrb[0].mxu0
          %v840 = vadd.f32 0.0, %v839
          %v841 = vpop.f32.mrb[0].mxu0
          %842 = vmatprep.mubr.f32.mxu0 0.0
          %843 = vmatmul.mubr.f32.gmra.mrb[0].mxu0 %v372
          %v844 = vpop.f32.mrb[0].mxu0
          %v845 = vadd.f32 0.0, %v844
          %v846 = vpop.f32.mrb[0].mxu0
          %847 = vmatprep.mubr.f32.mxu0 0.0
          %848 = vmatmul.mubr.f32.gmra.mrb[0].mxu0 %v375
          %v849 = vpop.f32.mrb[0].mxu0
          %v850 = vadd.f32 0.0, %v849
          %v851 = vpop.f32.mrb[0].mxu0
          %852 = vdwg.mxu0
          %s853 = scalar_lea.vmem %s1, 64
          %v854 = vld [vmem:[%s853] sm:$0xff]
          %v855 = vld [vmem:[%s853 + $0x8] sm:$0xff]
          %v856 = vld [vmem:[%s853 + $0x10] sm:$0xff]
          %v857 = vld [vmem:[%s853 + $0x18] sm:$0xff]
          %v859 = vsel %vm364, %v854, 0
          %v862 = vsel %vm364, %v855, 0
          %v865 = vsel %vm364, %v856, 0
          %v868 = vsel %vm364, %v857, 0
          %870 = vmatprep.subr.mxu0 0.0
          %871 = vmatpush1.msra.mxu0 %v835
          %872 = vmatprep.subr.mxu0 0.0
          %873 = vmatpush1.msra.mxu0 %v840
          %874 = vmatprep.subr.mxu0 0.0
          %875 = vmatpush1.msra.mxu0 %v845
          %876 = vmatprep.subr.mxu0 0.0
          %877 = vmatpush1.msra.mxu0 %v850
          %878 = vmatprep.subr.mxu0 0.0
          %879 = vmatpush1.msra.mxu0 0.0
          %880 = vmatprep.subr.mxu0 0.0
          %881 = vmatpush1.msra.mxu0 0.0
          %882 = vmatprep.subr.mxu0 0.0
          %883 = vmatpush1.msra.mxu0 0.0
          %884 = vmatprep.subr.mxu0 0.0
          %885 = vmatpush1.msra.mxu0 0.0
          %886 = vmatprep.subr.mxu0 0.0
          %887 = vmatpush1.msra.mxu0 0.0
          %888 = vmatprep.subr.mxu0 0.0
          %889 = vmatpush1.msra.mxu0 0.0
          %890 = vmatprep.subr.mxu0 0.0
          %891 = vmatpush1.msra.mxu0 0.0
          %892 = vmatprep.subr.mxu0 0.0
          %893 = vmatpush1.msra.mxu0 0.0
          %894 = vmatprep.subr.mxu0 0.0
          %895 = vmatpush1.msra.mxu0 0.0
          %896 = vmatprep.subr.mxu0 0.0
          %897 = vmatpush1.msra.mxu0 0.0
          %898 = vmatprep.subr.mxu0 0.0
          %899 = vmatpush1.msra.mxu0 0.0
          %900 = vmatprep.subr.mxu0 0.0
          %901 = vmatpush1.msra.mxu0 0.0
          %902 = vmatprep.subr.mxu0 0.0
          %903 = vmatpush1.msra.mxu0 0.0
          %904 = vmatprep.subr.mxu0 0.0
          %905 = vmatpush1.msra.mxu0 0.0
          %906 = vmatprep.subr.mxu0 0.0
          %907 = vmatpush1.msra.mxu0 0.0
          %908 = vmatprep.subr.mxu0 0.0
          %909 = vmatpush1.msra.mxu0 0.0
          %910 = vmatprep.subr.mxu0 0.0
          %911 = vmatpush1.msra.mxu0 0.0
          %912 = vmatprep.subr.mxu0 0.0
          %913 = vmatpush1.msra.mxu0 0.0
          %914 = vmatprep.subr.mxu0 0.0
          %915 = vmatpush1.msra.mxu0 0.0
          %916 = vmatprep.subr.mxu0 0.0
          %917 = vmatpush1.msra.mxu0 0.0
          %918 = vmatprep.subr.mxu0 0.0
          %919 = vmatpush1.msra.mxu0 0.0
          %920 = vmatprep.subr.mxu0 0.0
          %921 = vmatpush1.msra.mxu0 0.0
          %922 = vmatprep.subr.mxu0 0.0
          %923 = vmatpush1.msra.mxu0 0.0
          %924 = vmatprep.subr.mxu0 0.0
          %925 = vmatpush1.msra.mxu0 0.0
          %926 = vmatprep.subr.mxu0 0.0
          %927 = vmatpush1.msra.mxu0 0.0
          %928 = vmatprep.subr.mxu0 0.0
          %929 = vmatpush1.msra.mxu0 0.0
          %930 = vmatprep.subr.mxu0 0.0
          %931 = vmatpush1.msra.mxu0 0.0
          %932 = vmatprep.subr.mxu0 0.0
          %933 = vmatpush1.msra.mxu0 0.0
          %934 = vmatprep.mubr.f32.mxu0 0.0
          %935 = vmatmul.mubr.f32.gmra.mrb[0].mxu0 %v859
          %v936 = vpop.f32.mrb[0].mxu0
          %v937 = vadd.f32 0.0, %v936
          %v938 = vpop.f32.mrb[0].mxu0
          %939 = vmatprep.mubr.f32.mxu0 0.0
          %940 = vmatmul.mubr.f32.gmra.mrb[0].mxu0 %v862
          %v941 = vpop.f32.mrb[0].mxu0
          %v942 = vadd.f32 0.0, %v941
          %v943 = vpop.f32.mrb[0].mxu0
          %944 = vmatprep.mubr.f32.mxu0 0.0
          %945 = vmatmul.mubr.f32.gmra.mrb[0].mxu0 %v865
          %v946 = vpop.f32.mrb[0].mxu0
          %v947 = vadd.f32 0.0, %v946
          %v948 = vpop.f32.mrb[0].mxu0
          %949 = vmatprep.mubr.f32.mxu0 0.0
          %950 = vmatmul.mubr.f32.gmra.mrb[0].mxu0 %v868
          %v951 = vpop.f32.mrb[0].mxu0
          %v952 = vadd.f32 0.0, %v951
          %v953 = vpop.f32.mrb[0].mxu0
          %954 = vdwg.mxu0
          %v955 = vadd.f32 %v759, %v937
          %v956 = vadd.f32 %v760, %v942
          %v957 = vadd.f32 %v761, %v947
          %v958 = vadd.f32 %v762, %v952
          %s959 = scalar_lea.vmem %s2, 96
          %v960 = vld [vmem:[%s959] sm:$0xff]
          %v961 = vld [vmem:[%s959 + $0x8] sm:$0xff]
          %v962 = vld [vmem:[%s959 + $0x10] sm:$0xff]
          %v963 = vld [vmem:[%s959 + $0x18] sm:$0xff]
          %964 = vmatprep.subr.mxu0 0.0
          %965 = vmatpush1.msra.mxu0 %v960
          %966 = vmatprep.subr.mxu0 0.0
          %967 = vmatpush1.msra.mxu0 %v961
          %968 = vmatprep.subr.mxu0 0.0
          %969 = vmatpush1.msra.mxu0 %v962
          %970 = vmatprep.subr.mxu0 0.0
          %971 = vmatpush1.msra.mxu0 %v963
          %972 = vmatprep.subr.mxu0 0.0
          %973 = vmatpush1.msra.mxu0 0.0
          %974 = vmatprep.subr.mxu0 0.0
          %975 = vmatpush1.msra.mxu0 0.0
          %976 = vmatprep.subr.mxu0 0.0
          %977 = vmatpush1.msra.mxu0 0.0
          %978 = vmatprep.subr.mxu0 0.0
          %979 = vmatpush1.msra.mxu0 0.0
          %980 = vmatprep.subr.mxu0 0.0
          %981 = vmatpush1.msra.mxu0 0.0
          %982 = vmatprep.subr.mxu0 0.0
          %983 = vmatpush1.msra.mxu0 0.0
          %984 = vmatprep.subr.mxu0 0.0
          %985 = vmatpush1.msra.mxu0 0.0
          %986 = vmatprep.subr.mxu0 0.0
          %987 = vmatpush1.msra.mxu0 0.0
          %988 = vmatprep.subr.mxu0 0.0
          %989 = vmatpush1.msra.mxu0 0.0
          %990 = vmatprep.subr.mxu0 0.0
          %991 = vmatpush1.msra.mxu0 0.0
          %992 = vmatprep.subr.mxu0 0.0
          %993 = vmatpush1.msra.mxu0 0.0
          %994 = vmatprep.subr.mxu0 0.0
          %995 = vmatpush1.msra.mxu0 0.0
          %996 = vmatprep.subr.mxu0 0.0
          %997 = vmatpush1.msra.mxu0 0.0
          %998 = vmatprep.subr.mxu0 0.0
          %999 = vmatpush1.msra.mxu0 0.0
          %1000 = vmatprep.subr.mxu0 0.0
          %1001 = vmatpush1.msra.mxu0 0.0
          %1002 = vmatprep.subr.mxu0 0.0
          %1003 = vmatpush1.msra.mxu0 0.0
          %1004 = vmatprep.subr.mxu0 0.0
          %1005 = vmatpush1.msra.mxu0 0.0
          %1006 = vmatprep.subr.mxu0 0.0
          %1007 = vmatpush1.msra.mxu0 0.0
          %1008 = vmatprep.subr.mxu0 0.0
          %1009 = vmatpush1.msra.mxu0 0.0
          %1010 = vmatprep.subr.mxu0 0.0
          %1011 = vmatpush1.msra.mxu0 0.0
          %1012 = vmatprep.subr.mxu0 0.0
          %1013 = vmatpush1.msra.mxu0 0.0
          %1014 = vmatprep.subr.mxu0 0.0
          %1015 = vmatpush1.msra.mxu0 0.0
          %1016 = vmatprep.subr.mxu0 0.0
          %1017 = vmatpush1.msra.mxu0 0.0
          %1018 = vmatprep.subr.mxu0 0.0
          %1019 = vmatpush1.msra.mxu0 0.0
          %1020 = vmatprep.subr.mxu0 0.0
          %1021 = vmatpush1.msra.mxu0 0.0
          %1022 = vmatprep.subr.mxu0 0.0
          %1023 = vmatpush1.msra.mxu0 0.0
          %1024 = vmatprep.subr.mxu0 0.0
          %1025 = vmatpush1.msra.mxu0 0.0
          %1026 = vmatprep.subr.mxu0 0.0
          %1027 = vmatpush1.msra.mxu0 0.0
          %1028 = vmatprep.mubr.f32.mxu0 0.0
          %1029 = vmatmul.mubr.f32.gmra.mrb[0].mxu0 %v366
          %v1030 = vpop.f32.mrb[0].mxu0
          %v1031 = vadd.f32 0.0, %v1030
          %v1032 = vpop.f32.mrb[0].mxu0
          %1033 = vmatprep.mubr.f32.mxu0 0.0
          %1034 = vmatmul.mubr.f32.gmra.mrb[0].mxu0 %v369
          %v1035 = vpop.f32.mrb[0].mxu0
          %v1036 = vadd.f32 0.0, %v1035
          %v1037 = vpop.f32.mrb[0].mxu0
          %1038 = vmatprep.mubr.f32.mxu0 0.0
          %1039 = vmatmul.mubr.f32.gmra.mrb[0].mxu0 %v372
          %v1040 = vpop.f32.mrb[0].mxu0
          %v1041 = vadd.f32 0.0, %v1040
          %v1042 = vpop.f32.mrb[0].mxu0
          %1043 = vmatprep.mubr.f32.mxu0 0.0
          %1044 = vmatmul.mubr.f32.gmra.mrb[0].mxu0 %v375
          %v1045 = vpop.f32.mrb[0].mxu0
          %v1046 = vadd.f32 0.0, %v1045
          %v1047 = vpop.f32.mrb[0].mxu0
          %1048 = vdwg.mxu0
          %s1049 = scalar_lea.vmem %s1, 96
          %v1050 = vld [vmem:[%s1049] sm:$0xff]
          %v1051 = vld [vmem:[%s1049 + $0x8] sm:$0xff]
          %v1052 = vld [vmem:[%s1049 + $0x10] sm:$0xff]
          %v1053 = vld [vmem:[%s1049 + $0x18] sm:$0xff]
          %v1055 = vsel %vm364, %v1050, 0
          %v1058 = vsel %vm364, %v1051, 0
          %v1061 = vsel %vm364, %v1052, 0
          %v1064 = vsel %vm364, %v1053, 0
          %1066 = vmatprep.subr.mxu0 0.0
          %1067 = vmatpush1.msra.mxu0 %v1031
          %1068 = vmatprep.subr.mxu0 0.0
          %1069 = vmatpush1.msra.mxu0 %v1036
          %1070 = vmatprep.subr.mxu0 0.0
          %1071 = vmatpush1.msra.mxu0 %v1041
          %1072 = vmatprep.subr.mxu0 0.0
          %1073 = vmatpush1.msra.mxu0 %v1046
          %1074 = vmatprep.subr.mxu0 0.0
          %1075 = vmatpush1.msra.mxu0 0.0
          %1076 = vmatprep.subr.mxu0 0.0
          %1077 = vmatpush1.msra.mxu0 0.0
          %1078 = vmatprep.subr.mxu0 0.0
          %1079 = vmatpush1.msra.mxu0 0.0
          %1080 = vmatprep.subr.mxu0 0.0
          %1081 = vmatpush1.msra.mxu0 0.0
          %1082 = vmatprep.subr.mxu0 0.0
          %1083 = vmatpush1.msra.mxu0 0.0
          %1084 = vmatprep.subr.mxu0 0.0
          %1085 = vmatpush1.msra.mxu0 0.0
          %1086 = vmatprep.subr.mxu0 0.0
          %1087 = vmatpush1.msra.mxu0 0.0
          %1088 = vmatprep.subr.mxu0 0.0
          %1089 = vmatpush1.msra.mxu0 0.0
          %1090 = vmatprep.subr.mxu0 0.0
          %1091 = vmatpush1.msra.mxu0 0.0
          %1092 = vmatprep.subr.mxu0 0.0
          %1093 = vmatpush1.msra.mxu0 0.0
          %1094 = vmatprep.subr.mxu0 0.0
          %1095 = vmatpush1.msra.mxu0 0.0
          %1096 = vmatprep.subr.mxu0 0.0
          %1097 = vmatpush1.msra.mxu0 0.0
          %1098 = vmatprep.subr.mxu0 0.0
          %1099 = vmatpush1.msra.mxu0 0.0
          %1100 = vmatprep.subr.mxu0 0.0
          %1101 = vmatpush1.msra.mxu0 0.0
          %1102 = vmatprep.subr.mxu0 0.0
          %1103 = vmatpush1.msra.mxu0 0.0
          %1104 = vmatprep.subr.mxu0 0.0
          %1105 = vmatpush1.msra.mxu0 0.0
          %1106 = vmatprep.subr.mxu0 0.0
          %1107 = vmatpush1.msra.mxu0 0.0
          %1108 = vmatprep.subr.mxu0 0.0
          %1109 = vmatpush1.msra.mxu0 0.0
          %1110 = vmatprep.subr.mxu0 0.0
          %1111 = vmatpush1.msra.mxu0 0.0
          %1112 = vmatprep.subr.mxu0 0.0
          %1113 = vmatpush1.msra.mxu0 0.0
          %1114 = vmatprep.subr.mxu0 0.0
          %1115 = vmatpush1.msra.mxu0 0.0
          %1116 = vmatprep.subr.mxu0 0.0
          %1117 = vmatpush1.msra.mxu0 0.0
          %1118 = vmatprep.subr.mxu0 0.0
          %1119 = vmatpush1.msra.mxu0 0.0
          %1120 = vmatprep.subr.mxu0 0.0
          %1121 = vmatpush1.msra.mxu0 0.0
          %1122 = vmatprep.subr.mxu0 0.0
          %1123 = vmatpush1.msra.mxu0 0.0
          %1124 = vmatprep.subr.mxu0 0.0
          %1125 = vmatpush1.msra.mxu0 0.0
          %1126 = vmatprep.subr.mxu0 0.0
          %1127 = vmatpush1.msra.mxu0 0.0
          %1128 = vmatprep.subr.mxu0 0.0
          %1129 = vmatpush1.msra.mxu0 0.0
          %1130 = vmatprep.mubr.f32.mxu0 0.0
          %1131 = vmatmul.mubr.f32.gmra.mrb[0].mxu0 %v1055
          %v1132 = vpop.f32.mrb[0].mxu0
          %v1133 = vadd.f32 0.0, %v1132
          %v1134 = vpop.f32.mrb[0].mxu0
          %1135 = vmatprep.mubr.f32.mxu0 0.0
          %1136 = vmatmul.mubr.f32.gmra.mrb[0].mxu0 %v1058
          %v1137 = vpop.f32.mrb[0].mxu0
          %v1138 = vadd.f32 0.0, %v1137
          %v1139 = vpop.f32.mrb[0].mxu0
          %1140 = vmatprep.mubr.f32.mxu0 0.0
          %1141 = vmatmul.mubr.f32.gmra.mrb[0].mxu0 %v1061
          %v1142 = vpop.f32.mrb[0].mxu0
          %v1143 = vadd.f32 0.0, %v1142
          %v1144 = vpop.f32.mrb[0].mxu0
          %1145 = vmatprep.mubr.f32.mxu0 0.0
          %1146 = vmatmul.mubr.f32.gmra.mrb[0].mxu0 %v1064
          %v1147 = vpop.f32.mrb[0].mxu0
          %v1148 = vadd.f32 0.0, %v1147
          %v1149 = vpop.f32.mrb[0].mxu0
          %1150 = vdwg.mxu0
          %v1151 = vadd.f32 %v955, %v1133
          %v1152 = vadd.f32 %v956, %v1138
          %v1153 = vadd.f32 %v957, %v1143
          %v1154 = vadd.f32 %v958, %v1148
          %s1155 = scalar_lea.vmem %s2, 128
          %v1156 = vld [vmem:[%s1155] sm:$0xff]
          %v1157 = vld [vmem:[%s1155 + $0x8] sm:$0xff]
          %v1158 = vld [vmem:[%s1155 + $0x10] sm:$0xff]
          %v1159 = vld [vmem:[%s1155 + $0x18] sm:$0xff]
          %1160 = vmatprep.subr.mxu0 0.0
          %1161 = vmatpush1.msra.mxu0 %v1156
          %1162 = vmatprep.subr.mxu0 0.0
          %1163 = vmatpush1.msra.mxu0 %v1157
          %1164 = vmatprep.subr.mxu0 0.0
          %1165 = vmatpush1.msra.mxu0 %v1158
          %1166 = vmatprep.subr.mxu0 0.0
          %1167 = vmatpush1.msra.mxu0 %v1159
          %1168 = vmatprep.subr.mxu0 0.0
          %1169 = vmatpush1.msra.mxu0 0.0
          %1170 = vmatprep.subr.mxu0 0.0
          %1171 = vmatpush1.msra.mxu0 0.0
          %1172 = vmatprep.subr.mxu0 0.0
          %1173 = vmatpush1.msra.mxu0 0.0
          %1174 = vmatprep.subr.mxu0 0.0
          %1175 = vmatpush1.msra.mxu0 0.0
          %1176 = vmatprep.subr.mxu0 0.0
          %1177 = vmatpush1.msra.mxu0 0.0
          %1178 = vmatprep.subr.mxu0 0.0
          %1179 = vmatpush1.msra.mxu0 0.0
          %1180 = vmatprep.subr.mxu0 0.0
          %1181 = vmatpush1.msra.mxu0 0.0
          %1182 = vmatprep.subr.mxu0 0.0
          %1183 = vmatpush1.msra.mxu0 0.0
          %1184 = vmatprep.subr.mxu0 0.0
          %1185 = vmatpush1.msra.mxu0 0.0
          %1186 = vmatprep.subr.mxu0 0.0
          %1187 = vmatpush1.msra.mxu0 0.0
          %1188 = vmatprep.subr.mxu0 0.0
          %1189 = vmatpush1.msra.mxu0 0.0
          %1190 = vmatprep.subr.mxu0 0.0
          %1191 = vmatpush1.msra.mxu0 0.0
          %1192 = vmatprep.subr.mxu0 0.0
          %1193 = vmatpush1.msra.mxu0 0.0
          %1194 = vmatprep.subr.mxu0 0.0
          %1195 = vmatpush1.msra.mxu0 0.0
          %1196 = vmatprep.subr.mxu0 0.0
          %1197 = vmatpush1.msra.mxu0 0.0
          %1198 = vmatprep.subr.mxu0 0.0
          %1199 = vmatpush1.msra.mxu0 0.0
          %1200 = vmatprep.subr.mxu0 0.0
          %1201 = vmatpush1.msra.mxu0 0.0
          %1202 = vmatprep.subr.mxu0 0.0
          %1203 = vmatpush1.msra.mxu0 0.0
          %1204 = vmatprep.subr.mxu0 0.0
          %1205 = vmatpush1.msra.mxu0 0.0
          %1206 = vmatprep.subr.mxu0 0.0
          %1207 = vmatpush1.msra.mxu0 0.0
          %1208 = vmatprep.subr.mxu0 0.0
          %1209 = vmatpush1.msra.mxu0 0.0
          %1210 = vmatprep.subr.mxu0 0.0
          %1211 = vmatpush1.msra.mxu0 0.0
          %1212 = vmatprep.subr.mxu0 0.0
          %1213 = vmatpush1.msra.mxu0 0.0
          %1214 = vmatprep.subr.mxu0 0.0
          %1215 = vmatpush1.msra.mxu0 0.0
          %1216 = vmatprep.subr.mxu0 0.0
          %1217 = vmatpush1.msra.mxu0 0.0
          %1218 = vmatprep.subr.mxu0 0.0
          %1219 = vmatpush1.msra.mxu0 0.0
          %1220 = vmatprep.subr.mxu0 0.0
          %1221 = vmatpush1.msra.mxu0 0.0
          %1222 = vmatprep.subr.mxu0 0.0
          %1223 = vmatpush1.msra.mxu0 0.0
          %1224 = vmatprep.mubr.f32.mxu0 0.0
          %1225 = vmatmul.mubr.f32.gmra.mrb[0].mxu0 %v366
          %v1226 = vpop.f32.mrb[0].mxu0
          %v1227 = vadd.f32 0.0, %v1226
          %v1228 = vpop.f32.mrb[0].mxu0
          %1229 = vmatprep.mubr.f32.mxu0 0.0
          %1230 = vmatmul.mubr.f32.gmra.mrb[0].mxu0 %v369
          %v1231 = vpop.f32.mrb[0].mxu0
          %v1232 = vadd.f32 0.0, %v1231
          %v1233 = vpop.f32.mrb[0].mxu0
          %1234 = vmatprep.mubr.f32.mxu0 0.0
          %1235 = vmatmul.mubr.f32.gmra.mrb[0].mxu0 %v372
          %v1236 = vpop.f32.mrb[0].mxu0
          %v1237 = vadd.f32 0.0, %v1236
          %v1238 = vpop.f32.mrb[0].mxu0
          %1239 = vmatprep.mubr.f32.mxu0 0.0
          %1240 = vmatmul.mubr.f32.gmra.mrb[0].mxu0 %v375
          %v1241 = vpop.f32.mrb[0].mxu0
          %v1242 = vadd.f32 0.0, %v1241
          %v1243 = vpop.f32.mrb[0].mxu0
          %1244 = vdwg.mxu0
          %s1245 = scalar_lea.vmem %s1, 128
          %v1246 = vld [vmem:[%s1245] sm:$0xff]
          %v1247 = vld [vmem:[%s1245 + $0x8] sm:$0xff]
          %v1248 = vld [vmem:[%s1245 + $0x10] sm:$0xff]
          %v1249 = vld [vmem:[%s1245 + $0x18] sm:$0xff]
          %v1251 = vsel %vm364, %v1246, 0
          %v1254 = vsel %vm364, %v1247, 0
          %v1257 = vsel %vm364, %v1248, 0
          %v1260 = vsel %vm364, %v1249, 0
          %1262 = vmatprep.subr.mxu0 0.0
          %1263 = vmatpush1.msra.mxu0 %v1227
          %1264 = vmatprep.subr.mxu0 0.0
          %1265 = vmatpush1.msra.mxu0 %v1232
          %1266 = vmatprep.subr.mxu0 0.0
          %1267 = vmatpush1.msra.mxu0 %v1237
          %1268 = vmatprep.subr.mxu0 0.0
          %1269 = vmatpush1.msra.mxu0 %v1242
          %1270 = vmatprep.subr.mxu0 0.0
          %1271 = vmatpush1.msra.mxu0 0.0
          %1272 = vmatprep.subr.mxu0 0.0
          %1273 = vmatpush1.msra.mxu0 0.0
          %1274 = vmatprep.subr.mxu0 0.0
          %1275 = vmatpush1.msra.mxu0 0.0
          %1276 = vmatprep.subr.mxu0 0.0
          %1277 = vmatpush1.msra.mxu0 0.0
          %1278 = vmatprep.subr.mxu0 0.0
          %1279 = vmatpush1.msra.mxu0 0.0
          %1280 = vmatprep.subr.mxu0 0.0
          %1281 = vmatpush1.msra.mxu0 0.0
          %1282 = vmatprep.subr.mxu0 0.0
          %1283 = vmatpush1.msra.mxu0 0.0
          %1284 = vmatprep.subr.mxu0 0.0
          %1285 = vmatpush1.msra.mxu0 0.0
          %1286 = vmatprep.subr.mxu0 0.0
          %1287 = vmatpush1.msra.mxu0 0.0
          %1288 = vmatprep.subr.mxu0 0.0
          %1289 = vmatpush1.msra.mxu0 0.0
          %1290 = vmatprep.subr.mxu0 0.0
          %1291 = vmatpush1.msra.mxu0 0.0
          %1292 = vmatprep.subr.mxu0 0.0
          %1293 = vmatpush1.msra.mxu0 0.0
          %1294 = vmatprep.subr.mxu0 0.0
          %1295 = vmatpush1.msra.mxu0 0.0
          %1296 = vmatprep.subr.mxu0 0.0
          %1297 = vmatpush1.msra.mxu0 0.0
          %1298 = vmatprep.subr.mxu0 0.0
          %1299 = vmatpush1.msra.mxu0 0.0
          %1300 = vmatprep.subr.mxu0 0.0
          %1301 = vmatpush1.msra.mxu0 0.0
          %1302 = vmatprep.subr.mxu0 0.0
          %1303 = vmatpush1.msra.mxu0 0.0
          %1304 = vmatprep.subr.mxu0 0.0
          %1305 = vmatpush1.msra.mxu0 0.0
          %1306 = vmatprep.subr.mxu0 0.0
          %1307 = vmatpush1.msra.mxu0 0.0
          %1308 = vmatprep.subr.mxu0 0.0
          %1309 = vmatpush1.msra.mxu0 0.0
          %1310 = vmatprep.subr.mxu0 0.0
          %1311 = vmatpush1.msra.mxu0 0.0
          %1312 = vmatprep.subr.mxu0 0.0
          %1313 = vmatpush1.msra.mxu0 0.0
          %1314 = vmatprep.subr.mxu0 0.0
          %1315 = vmatpush1.msra.mxu0 0.0
          %1316 = vmatprep.subr.mxu0 0.0
          %1317 = vmatpush1.msra.mxu0 0.0
          %1318 = vmatprep.subr.mxu0 0.0
          %1319 = vmatpush1.msra.mxu0 0.0
          %1320 = vmatprep.subr.mxu0 0.0
          %1321 = vmatpush1.msra.mxu0 0.0
          %1322 = vmatprep.subr.mxu0 0.0
          %1323 = vmatpush1.msra.mxu0 0.0
          %1324 = vmatprep.subr.mxu0 0.0
          %1325 = vmatpush1.msra.mxu0 0.0
          %1326 = vmatprep.mubr.f32.mxu0 0.0
          %1327 = vmatmul.mubr.f32.gmra.mrb[0].mxu0 %v1251
          %v1328 = vpop.f32.mrb[0].mxu0
          %v1329 = vadd.f32 0.0, %v1328
          %v1330 = vpop.f32.mrb[0].mxu0
          %1331 = vmatprep.mubr.f32.mxu0 0.0
          %1332 = vmatmul.mubr.f32.gmra.mrb[0].mxu0 %v1254
          %v1333 = vpop.f32.mrb[0].mxu0
          %v1334 = vadd.f32 0.0, %v1333
          %v1335 = vpop.f32.mrb[0].mxu0
          %1336 = vmatprep.mubr.f32.mxu0 0.0
          %1337 = vmatmul.mubr.f32.gmra.mrb[0].mxu0 %v1257
          %v1338 = vpop.f32.mrb[0].mxu0
          %v1339 = vadd.f32 0.0, %v1338
          %v1340 = vpop.f32.mrb[0].mxu0
          %1341 = vmatprep.mubr.f32.mxu0 0.0
          %1342 = vmatmul.mubr.f32.gmra.mrb[0].mxu0 %v1260
          %v1343 = vpop.f32.mrb[0].mxu0
          %v1344 = vadd.f32 0.0, %v1343
          %v1345 = vpop.f32.mrb[0].mxu0
          %1346 = vdwg.mxu0
          %v1347 = vadd.f32 %v1151, %v1329
          %v1348 = vadd.f32 %v1152, %v1334
          %v1349 = vadd.f32 %v1153, %v1339
          %v1350 = vadd.f32 %v1154, %v1344
          %s1351 = scalar_lea.vmem %s2, 160
          %v1352 = vld [vmem:[%s1351] sm:$0xff]
          %v1353 = vld [vmem:[%s1351 + $0x8] sm:$0xff]
          %v1354 = vld [vmem:[%s1351 + $0x10] sm:$0xff]
          %v1355 = vld [vmem:[%s1351 + $0x18] sm:$0xff]
          %1356 = vmatprep.subr.mxu0 0.0
          %1357 = vmatpush1.msra.mxu0 %v1352
          %1358 = vmatprep.subr.mxu0 0.0
          %1359 = vmatpush1.msra.mxu0 %v1353
          %1360 = vmatprep.subr.mxu0 0.0
          %1361 = vmatpush1.msra.mxu0 %v1354
          %1362 = vmatprep.subr.mxu0 0.0
          %1363 = vmatpush1.msra.mxu0 %v1355
          %1364 = vmatprep.subr.mxu0 0.0
          %1365 = vmatpush1.msra.mxu0 0.0
          %1366 = vmatprep.subr.mxu0 0.0
          %1367 = vmatpush1.msra.mxu0 0.0
          %1368 = vmatprep.subr.mxu0 0.0
          %1369 = vmatpush1.msra.mxu0 0.0
          %1370 = vmatprep.subr.mxu0 0.0
          %1371 = vmatpush1.msra.mxu0 0.0
          %1372 = vmatprep.subr.mxu0 0.0
          %1373 = vmatpush1.msra.mxu0 0.0
          %1374 = vmatprep.subr.mxu0 0.0
          %1375 = vmatpush1.msra.mxu0 0.0
          %1376 = vmatprep.subr.mxu0 0.0
          %1377 = vmatpush1.msra.mxu0 0.0
          %1378 = vmatprep.subr.mxu0 0.0
          %1379 = vmatpush1.msra.mxu0 0.0
          %1380 = vmatprep.subr.mxu0 0.0
          %1381 = vmatpush1.msra.mxu0 0.0
          %1382 = vmatprep.subr.mxu0 0.0
          %1383 = vmatpush1.msra.mxu0 0.0
          %1384 = vmatprep.subr.mxu0 0.0
          %1385 = vmatpush1.msra.mxu0 0.0
          %1386 = vmatprep.subr.mxu0 0.0
          %1387 = vmatpush1.msra.mxu0 0.0
          %1388 = vmatprep.subr.mxu0 0.0
          %1389 = vmatpush1.msra.mxu0 0.0
          %1390 = vmatprep.subr.mxu0 0.0
          %1391 = vmatpush1.msra.mxu0 0.0
          %1392 = vmatprep.subr.mxu0 0.0
          %1393 = vmatpush1.msra.mxu0 0.0
          %1394 = vmatprep.subr.mxu0 0.0
          %1395 = vmatpush1.msra.mxu0 0.0
          %1396 = vmatprep.subr.mxu0 0.0
          %1397 = vmatpush1.msra.mxu0 0.0
          %1398 = vmatprep.subr.mxu0 0.0
          %1399 = vmatpush1.msra.mxu0 0.0
          %1400 = vmatprep.subr.mxu0 0.0
          %1401 = vmatpush1.msra.mxu0 0.0
          %1402 = vmatprep.subr.mxu0 0.0
          %1403 = vmatpush1.msra.mxu0 0.0
          %1404 = vmatprep.subr.mxu0 0.0
          %1405 = vmatpush1.msra.mxu0 0.0
          %1406 = vmatprep.subr.mxu0 0.0
          %1407 = vmatpush1.msra.mxu0 0.0
          %1408 = vmatprep.subr.mxu0 0.0
          %1409 = vmatpush1.msra.mxu0 0.0
          %1410 = vmatprep.subr.mxu0 0.0
          %1411 = vmatpush1.msra.mxu0 0.0
          %1412 = vmatprep.subr.mxu0 0.0
          %1413 = vmatpush1.msra.mxu0 0.0
          %1414 = vmatprep.subr.mxu0 0.0
          %1415 = vmatpush1.msra.mxu0 0.0
          %1416 = vmatprep.subr.mxu0 0.0
          %1417 = vmatpush1.msra.mxu0 0.0
          %1418 = vmatprep.subr.mxu0 0.0
          %1419 = vmatpush1.msra.mxu0 0.0
          %1420 = vmatprep.mubr.f32.mxu0 0.0
          %1421 = vmatmul.mubr.f32.gmra.mrb[0].mxu0 %v366
          %v1422 = vpop.f32.mrb[0].mxu0
          %v1423 = vadd.f32 0.0, %v1422
          %v1424 = vpop.f32.mrb[0].mxu0
          %1425 = vmatprep.mubr.f32.mxu0 0.0
          %1426 = vmatmul.mubr.f32.gmra.mrb[0].mxu0 %v369
          %v1427 = vpop.f32.mrb[0].mxu0
          %v1428 = vadd.f32 0.0, %v1427
          %v1429 = vpop.f32.mrb[0].mxu0
          %1430 = vmatprep.mubr.f32.mxu0 0.0
          %1431 = vmatmul.mubr.f32.gmra.mrb[0].mxu0 %v372
          %v1432 = vpop.f32.mrb[0].mxu0
          %v1433 = vadd.f32 0.0, %v1432
          %v1434 = vpop.f32.mrb[0].mxu0
          %1435 = vmatprep.mubr.f32.mxu0 0.0
          %1436 = vmatmul.mubr.f32.gmra.mrb[0].mxu0 %v375
          %v1437 = vpop.f32.mrb[0].mxu0
          %v1438 = vadd.f32 0.0, %v1437
          %v1439 = vpop.f32.mrb[0].mxu0
          %1440 = vdwg.mxu0
          %s1441 = scalar_lea.vmem %s1, 160
          %v1442 = vld [vmem:[%s1441] sm:$0xff]
          %v1443 = vld [vmem:[%s1441 + $0x8] sm:$0xff]
          %v1444 = vld [vmem:[%s1441 + $0x10] sm:$0xff]
          %v1445 = vld [vmem:[%s1441 + $0x18] sm:$0xff]
          %v1447 = vsel %vm364, %v1442, 0
          %v1450 = vsel %vm364, %v1443, 0
          %v1453 = vsel %vm364, %v1444, 0
          %v1456 = vsel %vm364, %v1445, 0
          %1458 = vmatprep.subr.mxu0 0.0
          %1459 = vmatpush1.msra.mxu0 %v1423
          %1460 = vmatprep.subr.mxu0 0.0
          %1461 = vmatpush1.msra.mxu0 %v1428
          %1462 = vmatprep.subr.mxu0 0.0
          %1463 = vmatpush1.msra.mxu0 %v1433
          %1464 = vmatprep.subr.mxu0 0.0
          %1465 = vmatpush1.msra.mxu0 %v1438
          %1466 = vmatprep.subr.mxu0 0.0
          %1467 = vmatpush1.msra.mxu0 0.0
          %1468 = vmatprep.subr.mxu0 0.0
          %1469 = vmatpush1.msra.mxu0 0.0
          %1470 = vmatprep.subr.mxu0 0.0
          %1471 = vmatpush1.msra.mxu0 0.0
          %1472 = vmatprep.subr.mxu0 0.0
          %1473 = vmatpush1.msra.mxu0 0.0
          %1474 = vmatprep.subr.mxu0 0.0
          %1475 = vmatpush1.msra.mxu0 0.0
          %1476 = vmatprep.subr.mxu0 0.0
          %1477 = vmatpush1.msra.mxu0 0.0
          %1478 = vmatprep.subr.mxu0 0.0
          %1479 = vmatpush1.msra.mxu0 0.0
          %1480 = vmatprep.subr.mxu0 0.0
          %1481 = vmatpush1.msra.mxu0 0.0
          %1482 = vmatprep.subr.mxu0 0.0
          %1483 = vmatpush1.msra.mxu0 0.0
          %1484 = vmatprep.subr.mxu0 0.0
          %1485 = vmatpush1.msra.mxu0 0.0
          %1486 = vmatprep.subr.mxu0 0.0
          %1487 = vmatpush1.msra.mxu0 0.0
          %1488 = vmatprep.subr.mxu0 0.0
          %1489 = vmatpush1.msra.mxu0 0.0
          %1490 = vmatprep.subr.mxu0 0.0
          %1491 = vmatpush1.msra.mxu0 0.0
          %1492 = vmatprep.subr.mxu0 0.0
          %1493 = vmatpush1.msra.mxu0 0.0
          %1494 = vmatprep.subr.mxu0 0.0
          %1495 = vmatpush1.msra.mxu0 0.0
          %1496 = vmatprep.subr.mxu0 0.0
          %1497 = vmatpush1.msra.mxu0 0.0
          %1498 = vmatprep.subr.mxu0 0.0
          %1499 = vmatpush1.msra.mxu0 0.0
          %1500 = vmatprep.subr.mxu0 0.0
          %1501 = vmatpush1.msra.mxu0 0.0
          %1502 = vmatprep.subr.mxu0 0.0
          %1503 = vmatpush1.msra.mxu0 0.0
          %1504 = vmatprep.subr.mxu0 0.0
          %1505 = vmatpush1.msra.mxu0 0.0
          %1506 = vmatprep.subr.mxu0 0.0
          %1507 = vmatpush1.msra.mxu0 0.0
          %1508 = vmatprep.subr.mxu0 0.0
          %1509 = vmatpush1.msra.mxu0 0.0
          %1510 = vmatprep.subr.mxu0 0.0
          %1511 = vmatpush1.msra.mxu0 0.0
          %1512 = vmatprep.subr.mxu0 0.0
          %1513 = vmatpush1.msra.mxu0 0.0
          %1514 = vmatprep.subr.mxu0 0.0
          %1515 = vmatpush1.msra.mxu0 0.0
          %1516 = vmatprep.subr.mxu0 0.0
          %1517 = vmatpush1.msra.mxu0 0.0
          %1518 = vmatprep.subr.mxu0 0.0
          %1519 = vmatpush1.msra.mxu0 0.0
          %1520 = vmatprep.subr.mxu0 0.0
          %1521 = vmatpush1.msra.mxu0 0.0
          %1522 = vmatprep.mubr.f32.mxu0 0.0
          %1523 = vmatmul.mubr.f32.gmra.mrb[0].mxu0 %v1447
          %v1524 = vpop.f32.mrb[0].mxu0
          %v1525 = vadd.f32 0.0, %v1524
          %v1526 = vpop.f32.mrb[0].mxu0
          %1527 = vmatprep.mubr.f32.mxu0 0.0
          %1528 = vmatmul.mubr.f32.gmra.mrb[0].mxu0 %v1450
          %v1529 = vpop.f32.mrb[0].mxu0
          %v1530 = vadd.f32 0.0, %v1529
          %v1531 = vpop.f32.mrb[0].mxu0
          %1532 = vmatprep.mubr.f32.mxu0 0.0
          %1533 = vmatmul.mubr.f32.gmra.mrb[0].mxu0 %v1453
          %v1534 = vpop.f32.mrb[0].mxu0
          %v1535 = vadd.f32 0.0, %v1534
          %v1536 = vpop.f32.mrb[0].mxu0
          %1537 = vmatprep.mubr.f32.mxu0 0.0
          %1538 = vmatmul.mubr.f32.gmra.mrb[0].mxu0 %v1456
          %v1539 = vpop.f32.mrb[0].mxu0
          %v1540 = vadd.f32 0.0, %v1539
          %v1541 = vpop.f32.mrb[0].mxu0
          %1542 = vdwg.mxu0
          %v1543 = vadd.f32 %v1347, %v1525
          %v1544 = vadd.f32 %v1348, %v1530
          %v1545 = vadd.f32 %v1349, %v1535
          %v1546 = vadd.f32 %v1350, %v1540
          %s1547 = scalar_lea.vmem %s2, 192
          %v1548 = vld [vmem:[%s1547] sm:$0xff]
          %v1549 = vld [vmem:[%s1547 + $0x8] sm:$0xff]
          %v1550 = vld [vmem:[%s1547 + $0x10] sm:$0xff]
          %v1551 = vld [vmem:[%s1547 + $0x18] sm:$0xff]
          %1552 = vmatprep.subr.mxu0 0.0
          %1553 = vmatpush1.msra.mxu0 %v1548
          %1554 = vmatprep.subr.mxu0 0.0
          %1555 = vmatpush1.msra.mxu0 %v1549
          %1556 = vmatprep.subr.mxu0 0.0
          %1557 = vmatpush1.msra.mxu0 %v1550
          %1558 = vmatprep.subr.mxu0 0.0
          %1559 = vmatpush1.msra.mxu0 %v1551
          %1560 = vmatprep.subr.mxu0 0.0
          %1561 = vmatpush1.msra.mxu0 0.0
          %1562 = vmatprep.subr.mxu0 0.0
          %1563 = vmatpush1.msra.mxu0 0.0
          %1564 = vmatprep.subr.mxu0 0.0
          %1565 = vmatpush1.msra.mxu0 0.0
          %1566 = vmatprep.subr.mxu0 0.0
          %1567 = vmatpush1.msra.mxu0 0.0
          %1568 = vmatprep.subr.mxu0 0.0
          %1569 = vmatpush1.msra.mxu0 0.0
          %1570 = vmatprep.subr.mxu0 0.0
          %1571 = vmatpush1.msra.mxu0 0.0
          %1572 = vmatprep.subr.mxu0 0.0
          %1573 = vmatpush1.msra.mxu0 0.0
          %1574 = vmatprep.subr.mxu0 0.0
          %1575 = vmatpush1.msra.mxu0 0.0
          %1576 = vmatprep.subr.mxu0 0.0
          %1577 = vmatpush1.msra.mxu0 0.0
          %1578 = vmatprep.subr.mxu0 0.0
          %1579 = vmatpush1.msra.mxu0 0.0
          %1580 = vmatprep.subr.mxu0 0.0
          %1581 = vmatpush1.msra.mxu0 0.0
          %1582 = vmatprep.subr.mxu0 0.0
          %1583 = vmatpush1.msra.mxu0 0.0
          %1584 = vmatprep.subr.mxu0 0.0
          %1585 = vmatpush1.msra.mxu0 0.0
          %1586 = vmatprep.subr.mxu0 0.0
          %1587 = vmatpush1.msra.mxu0 0.0
          %1588 = vmatprep.subr.mxu0 0.0
          %1589 = vmatpush1.msra.mxu0 0.0
          %1590 = vmatprep.subr.mxu0 0.0
          %1591 = vmatpush1.msra.mxu0 0.0
          %1592 = vmatprep.subr.mxu0 0.0
          %1593 = vmatpush1.msra.mxu0 0.0
          %1594 = vmatprep.subr.mxu0 0.0
          %1595 = vmatpush1.msra.mxu0 0.0
          %1596 = vmatprep.subr.mxu0 0.0
          %1597 = vmatpush1.msra.mxu0 0.0
          %1598 = vmatprep.subr.mxu0 0.0
          %1599 = vmatpush1.msra.mxu0 0.0
          %1600 = vmatprep.subr.mxu0 0.0
          %1601 = vmatpush1.msra.mxu0 0.0
          %1602 = vmatprep.subr.mxu0 0.0
          %1603 = vmatpush1.msra.mxu0 0.0
          %1604 = vmatprep.subr.mxu0 0.0
          %1605 = vmatpush1.msra.mxu0 0.0
          %1606 = vmatprep.subr.mxu0 0.0
          %1607 = vmatpush1.msra.mxu0 0.0
          %1608 = vmatprep.subr.mxu0 0.0
          %1609 = vmatpush1.msra.mxu0 0.0
          %1610 = vmatprep.subr.mxu0 0.0
          %1611 = vmatpush1.msra.mxu0 0.0
          %1612 = vmatprep.subr.mxu0 0.0
          %1613 = vmatpush1.msra.mxu0 0.0
          %1614 = vmatprep.subr.mxu0 0.0
          %1615 = vmatpush1.msra.mxu0 0.0
          %1616 = vmatprep.mubr.f32.mxu0 0.0
          %1617 = vmatmul.mubr.f32.gmra.mrb[0].mxu0 %v366
          %v1618 = vpop.f32.mrb[0].mxu0
          %v1619 = vadd.f32 0.0, %v1618
          %v1620 = vpop.f32.mrb[0].mxu0
          %1621 = vmatprep.mubr.f32.mxu0 0.0
          %1622 = vmatmul.mubr.f32.gmra.mrb[0].mxu0 %v369
          %v1623 = vpop.f32.mrb[0].mxu0
          %v1624 = vadd.f32 0.0, %v1623
          %v1625 = vpop.f32.mrb[0].mxu0
          %1626 = vmatprep.mubr.f32.mxu0 0.0
          %1627 = vmatmul.mubr.f32.gmra.mrb[0].mxu0 %v372
          %v1628 = vpop.f32.mrb[0].mxu0
          %v1629 = vadd.f32 0.0, %v1628
          %v1630 = vpop.f32.mrb[0].mxu0
          %1631 = vmatprep.mubr.f32.mxu0 0.0
          %1632 = vmatmul.mubr.f32.gmra.mrb[0].mxu0 %v375
          %v1633 = vpop.f32.mrb[0].mxu0
          %v1634 = vadd.f32 0.0, %v1633
          %v1635 = vpop.f32.mrb[0].mxu0
          %1636 = vdwg.mxu0
          %s1637 = scalar_lea.vmem %s1, 192
          %v1638 = vld [vmem:[%s1637] sm:$0xff]
          %v1639 = vld [vmem:[%s1637 + $0x8] sm:$0xff]
          %v1640 = vld [vmem:[%s1637 + $0x10] sm:$0xff]
          %v1641 = vld [vmem:[%s1637 + $0x18] sm:$0xff]
          %v1643 = vsel %vm364, %v1638, 0
          %v1646 = vsel %vm364, %v1639, 0
          %v1649 = vsel %vm364, %v1640, 0
          %v1652 = vsel %vm364, %v1641, 0
          %1654 = vmatprep.subr.mxu0 0.0
          %1655 = vmatpush1.msra.mxu0 %v1619
          %1656 = vmatprep.subr.mxu0 0.0
          %1657 = vmatpush1.msra.mxu0 %v1624
          %1658 = vmatprep.subr.mxu0 0.0
          %1659 = vmatpush1.msra.mxu0 %v1629
          %1660 = vmatprep.subr.mxu0 0.0
          %1661 = vmatpush1.msra.mxu0 %v1634
          %1662 = vmatprep.subr.mxu0 0.0
          %1663 = vmatpush1.msra.mxu0 0.0
          %1664 = vmatprep.subr.mxu0 0.0
          %1665 = vmatpush1.msra.mxu0 0.0
          %1666 = vmatprep.subr.mxu0 0.0
          %1667 = vmatpush1.msra.mxu0 0.0
          %1668 = vmatprep.subr.mxu0 0.0
          %1669 = vmatpush1.msra.mxu0 0.0
          %1670 = vmatprep.subr.mxu0 0.0
          %1671 = vmatpush1.msra.mxu0 0.0
          %1672 = vmatprep.subr.mxu0 0.0
          %1673 = vmatpush1.msra.mxu0 0.0
          %1674 = vmatprep.subr.mxu0 0.0
          %1675 = vmatpush1.msra.mxu0 0.0
          %1676 = vmatprep.subr.mxu0 0.0
          %1677 = vmatpush1.msra.mxu0 0.0
          %1678 = vmatprep.subr.mxu0 0.0
          %1679 = vmatpush1.msra.mxu0 0.0
          %1680 = vmatprep.subr.mxu0 0.0
          %1681 = vmatpush1.msra.mxu0 0.0
          %1682 = vmatprep.subr.mxu0 0.0
          %1683 = vmatpush1.msra.mxu0 0.0
          %1684 = vmatprep.subr.mxu0 0.0
          %1685 = vmatpush1.msra.mxu0 0.0
          %1686 = vmatprep.subr.mxu0 0.0
          %1687 = vmatpush1.msra.mxu0 0.0
          %1688 = vmatprep.subr.mxu0 0.0
          %1689 = vmatpush1.msra.mxu0 0.0
          %1690 = vmatprep.subr.mxu0 0.0
          %1691 = vmatpush1.msra.mxu0 0.0
          %1692 = vmatprep.subr.mxu0 0.0
          %1693 = vmatpush1.msra.mxu0 0.0
          %1694 = vmatprep.subr.mxu0 0.0
          %1695 = vmatpush1.msra.mxu0 0.0
          %1696 = vmatprep.subr.mxu0 0.0
          %1697 = vmatpush1.msra.mxu0 0.0
          %1698 = vmatprep.subr.mxu0 0.0
          %1699 = vmatpush1.msra.mxu0 0.0
          %1700 = vmatprep.subr.mxu0 0.0
          %1701 = vmatpush1.msra.mxu0 0.0
          %1702 = vmatprep.subr.mxu0 0.0
          %1703 = vmatpush1.msra.mxu0 0.0
          %1704 = vmatprep.subr.mxu0 0.0
          %1705 = vmatpush1.msra.mxu0 0.0
          %1706 = vmatprep.subr.mxu0 0.0
          %1707 = vmatpush1.msra.mxu0 0.0
          %1708 = vmatprep.subr.mxu0 0.0
          %1709 = vmatpush1.msra.mxu0 0.0
          %1710 = vmatprep.subr.mxu0 0.0
          %1711 = vmatpush1.msra.mxu0 0.0
          %1712 = vmatprep.subr.mxu0 0.0
          %1713 = vmatpush1.msra.mxu0 0.0
          %1714 = vmatprep.subr.mxu0 0.0
          %1715 = vmatpush1.msra.mxu0 0.0
          %1716 = vmatprep.subr.mxu0 0.0
          %1717 = vmatpush1.msra.mxu0 0.0
          %1718 = vmatprep.mubr.f32.mxu0 0.0
          %1719 = vmatmul.mubr.f32.gmra.mrb[0].mxu0 %v1643
          %v1720 = vpop.f32.mrb[0].mxu0
          %v1721 = vadd.f32 0.0, %v1720
          %v1722 = vpop.f32.mrb[0].mxu0
          %1723 = vmatprep.mubr.f32.mxu0 0.0
          %1724 = vmatmul.mubr.f32.gmra.mrb[0].mxu0 %v1646
          %v1725 = vpop.f32.mrb[0].mxu0
          %v1726 = vadd.f32 0.0, %v1725
          %v1727 = vpop.f32.mrb[0].mxu0
          %1728 = vmatprep.mubr.f32.mxu0 0.0
          %1729 = vmatmul.mubr.f32.gmra.mrb[0].mxu0 %v1649
          %v1730 = vpop.f32.mrb[0].mxu0
          %v1731 = vadd.f32 0.0, %v1730
          %v1732 = vpop.f32.mrb[0].mxu0
          %1733 = vmatprep.mubr.f32.mxu0 0.0
          %1734 = vmatmul.mubr.f32.gmra.mrb[0].mxu0 %v1652
          %v1735 = vpop.f32.mrb[0].mxu0
          %v1736 = vadd.f32 0.0, %v1735
          %v1737 = vpop.f32.mrb[0].mxu0
          %1738 = vdwg.mxu0
          %v1739 = vadd.f32 %v1543, %v1721
          %v1740 = vadd.f32 %v1544, %v1726
          %v1741 = vadd.f32 %v1545, %v1731
          %v1742 = vadd.f32 %v1546, %v1736
          %v1743 = vxor.u32 %v1739, 2147483648
          %v1744 = vxor.u32 %v1740, 2147483648
          %v1745 = vxor.u32 %v1741, 2147483648
          %v1746 = vxor.u32 %v1742, 2147483648
          %v1747 = vmul.f32 %v1743, 1.442695
          %v1748 = vpow.pop %v1747
          %v1749 = vmul.f32 %v1744, 1.442695
          %v1750 = vpow.pop %v1749
          %v1751 = vmul.f32 %v1745, 1.442695
          %v1752 = vpow.pop %v1751
          %v1753 = vmul.f32 %v1746, 1.442695
          %v1754 = vpow.pop %v1753
          %v1755 = vadd.f32 %v1748, 1.0
          %v1756 = vadd.f32 %v1750, 1.0
          %v1757 = vadd.f32 %v1752, 1.0
          %v1758 = vadd.f32 %v1754, 1.0
          %v1759 = vrcp.pop %v1755
          %v1760 = vmul.f32 1.0, %v1759
          %v1761 = vrcp.pop %v1756
          %v1762 = vmul.f32 1.0, %v1761
          %v1763 = vrcp.pop %v1757
          %v1764 = vmul.f32 1.0, %v1763
          %v1765 = vrcp.pop %v1758
          %v1766 = vmul.f32 1.0, %v1765
          %1767 = vst.msk [vmem:[#allocation8] sm:$0xff] %vm281, %v1760
          %1768 = vst.msk [vmem:[#allocation8 + $0x8] sm:$0xff] %vm281, %v1762
          %1769 = vst.msk [vmem:[#allocation8 + $0x10] sm:$0xff] %vm281, %v1764
          %1770 = vst.msk [vmem:[#allocation8 + $0x18] sm:$0xff] %vm281, %v1766
        $region48: #{tpu_custom_call.1} parent=35 // pred_fallthru
          _
        // Predicated region
        $region49: #{tpu_custom_call.1} parent=35 // pred_check
          %p1771 = pneg %p141
        $region50: #{tpu_custom_call.1} parent=35 // pred_check_branch
          %1773 = sbr.rel (%p1771) target = $region52
        $region51: #{tpu_custom_call.1} parent=35 // pred_region
          %s1774 = smul.u32 2, %s24
          %s1776 = ssub.s32 512, 512
          %1777 = vsyncadd [#allocation7], %s1776
          %s1778 = smul.addr %s1774, 2
          %s1779 = smul.addr %s1778, 128
          %s1780 = scalar_lea.hbm %s4, %s1779
          %s1781 = sshll.u32 [#allocation8], 4
          %s1782 = int_to_ptr.vmem [resolvable:$true] %s1781
          %1787 = dma.vmem_to_hbm [thread:$0]  %s1782, 512, %s1780, [#allocation7], 128, 128, 8
        $region52: #{tpu_custom_call.1} parent=35 // pred_fallthru
          _
        // Predicated region
        $region53: #{tpu_custom_call.1} parent=35 // pred_check
          %p1788 = pneg %p141
        $region54: #{tpu_custom_call.1} parent=35 // pred_check_branch
          %1790 = sbr.rel (%p1788) target = $region56
        $region55: #{tpu_custom_call.1} parent=35 // pred_region
          %1791 = dma.done [#allocation7], 512
        $region56: #{tpu_custom_call.1} parent=35 // pred_fallthru
          _
      $region36: #{tpu_custom_call.1} parent=5 // pred_fallthru
        _
      %p1792 = scmp.le.s32.totalorder 2, %s15
      // Predicated region
      $region57: #{tpu_custom_call.1} parent=5 // pred_check
        %p1793 = pneg %p1792
      $region58: #{tpu_custom_call.1} parent=5 // pred_check_branch
        %1795 = sbr.rel (%p1793) target = $region60
      $region59: #{tpu_custom_call.1} parent=5 // pred_region
        %s1796 = ssub.s32 %s15, 2
      $region60: #{tpu_custom_call.1} parent=5 // pred_fallthru
        _
    $region6: #{tpu_custom_call.1} parent=1 // loop_footer
      %s19 = sadd.s32 1, %s15
    $region7: #{tpu_custom_call.1} parent=1 // loop_footer_branch
      %14 = sbr.rel target = $region3
    $region8: #{tpu_custom_call.1} parent=1 // loop_exit
      _
    %1797 = vsyncpa [#allocation6], 1
    %s1798 = scalar_lea.sflag [#allocation6], 1
    %1799 = vsyncpa %s1798, 1
    %1800 = vsyncpa [#allocation7], 1
    %s1801 = scalar_lea.sflag [#allocation7], 1
    %1802 = vsyncpa %s1801, 1

</llo_original>
